<compile_context>
chip_gen: v6e
topology: v6e:2x2x1
jax: 0.10.0
libtpu: 0.0.40
codegen_flags: <defaults>
</compile_context>

<pallas_src>
import functools

import jax
import jax.numpy as jnp
from jax.experimental import pallas as pl
from jax.experimental.pallas import tpu as pltpu


def fused_nerf_kernel(x_ref, w1, b1, w2, b2, w3, b3, w4, b4, out_ref):
    """One row-tile of the fused (coarse | fine) 4-layer MLP, transposed store."""
    # In-kernel cast to bf16 (free filler under the MXU; avoids a host-side pass).
    x = x_ref[...].astype(w1.dtype)
    h = jnp.dot(x, w1[...], preferred_element_type=jnp.float32) + b1[...]
    h = jnp.maximum(h, 0.0)
    h = jnp.dot(h.astype(w2.dtype), w2[...], preferred_element_type=jnp.float32) + b2[...]
    h = jnp.maximum(h, 0.0)
    h = jnp.dot(h.astype(w3.dtype), w3[...], preferred_element_type=jnp.float32) + b3[...]
    h = jnp.maximum(h, 0.0)
    out = jnp.dot(h.astype(w4.dtype), w4[...], preferred_element_type=jnp.float32) + b4[...]
    # Lane-dense store: (tile_n, 8) -> (8, tile_n); last dim is a multiple of
    # 128 so every vst is unmasked. Transpose uses the idle XLU slot.
    out_ref[...] = out.T.astype(out_ref.dtype)


def _block_diag(a, b):
    za = jnp.zeros((a.shape[0], b.shape[1]), a.dtype)
    zb = jnp.zeros((b.shape[0], a.shape[1]), b.dtype)
    return jnp.concatenate(
        [jnp.concatenate([a, za], axis=1),
         jnp.concatenate([zb, b], axis=1)], axis=0)


def _round_up(v, m):
    return -(-v // m) * m


@functools.partial(jax.jit, static_argnames=("tile_n",))
def coarse_fine_nerf(x, coarse_params, fine_params, *, tile_n=1024):
    N, D = x.shape
    w1c, b1c, w2c, b2c, w3c, b3c, w4c, b4c = coarse_params
    w1f, b1f, w2f, b2f, w3f, b3f, w4f, b4f = fine_params
    H = w1c.shape[1]
    out_dim = w4c.shape[1]
    Fh = 2 * H           # fused hidden width (128 when H=64)
    OW = 2 * out_dim     # fused output width (coarse | fine)

    compute_dtype = jnp.bfloat16

    # Host-side parameter packing (tiny tensors, done once per call).
    W1 = jnp.concatenate([w1c, w1f], axis=1).astype(compute_dtype)
    W2 = _block_diag(w2c, w2f).astype(compute_dtype)
    W3 = _block_diag(w3c, w3f).astype(compute_dtype)
    W4 = _block_diag(w4c, w4f).astype(compute_dtype)
    B1 = jnp.concatenate([b1c, b1f], axis=1).astype(jnp.float32)
    B2 = jnp.concatenate([b2c, b2f], axis=1).astype(jnp.float32)
    B3 = jnp.concatenate([b3c, b3f], axis=1).astype(jnp.float32)
    B4 = jnp.concatenate([b4c, b4f], axis=1).astype(jnp.float32)
    params = (W1, B1, W2, B2, W3, B3, W4, B4)

    # Adaptive tile size (multiple of 128 so the transposed output block is
    # lane-dense): big enough to amortize per-step overhead, small enough that
    # at least ~4 tiles exist so both v7x TensorCores have work and the
    # pipeline stays overlapped. VMEM footprint is tiny at these sizes.
    target_tiles = 4
    tn = min(tile_n, max(128, _round_up(-(-N // target_tiles), 128)))
    tn = _round_up(tn, 128)
    n_tiles = -(-N // tn)
    Np = n_tiles * tn

    # x stays in its original f32 dtype (no host-side cast pass); pad only the
    # ragged tail when the grid does not cover N exactly.
    x_in = x if Np == N else jnp.pad(x, ((0, Np - N), (0, 0)))

    def resident(shape):
        # Small parameter tensor: keep whole tensor resident, same block for
        # every grid step.
        return pl.BlockSpec(shape, lambda i: (0,) * len(shape))

    param_specs = [resident(p.shape) for p in params]

    flops = 2 * Np * (D * Fh + Fh * Fh + Fh * Fh + Fh * OW)
    bytes_accessed = (
        x_in.size * x_in.dtype.itemsize
        + sum(p.size * p.dtype.itemsize for p in params)
        + OW * Np * 4
    )

    fused_t = pl.pallas_call(
        fused_nerf_kernel,
        # Transposed (lane-dense) output layout: (OW, Np).
        out_shape=jax.ShapeDtypeStruct((OW, Np), jnp.float32),
        grid_spec=pltpu.PrefetchScalarGridSpec(
            num_scalar_prefetch=0,
            grid=(n_tiles,),
            in_specs=[pl.BlockSpec((tn, D), lambda i: (i, 0))] + param_specs,
            out_specs=pl.BlockSpec((OW, tn), lambda i: (0, i)),
        ),
        compiler_params=pltpu.CompilerParams(
            dimension_semantics=("parallel",),
        ),
        cost_estimate=pl.CostEstimate(
            flops=flops, transcendentals=0, bytes_accessed=bytes_accessed),
    )(x_in, *params)

    # Split fused (OW, Np) back into coarse/fine (N, out_dim).
    out_c = fused_t[:out_dim, :N].T
    out_f = fused_t[out_dim:, :N].T
    return out_c, out_f


def init_nerf_params(key, input_dim, hidden_dim):
    """Deterministic init mimicking nn.Linear default (uniform +/- 1/sqrt(fan_in))."""
    dims = [(input_dim, hidden_dim),
            (hidden_dim, hidden_dim),
            (hidden_dim, hidden_dim),
            (hidden_dim, 4)]
    params = []
    for (din, dout) in dims:
        key, kw, kb = jax.random.split(key, 3)
        bound = 1.0 / (din ** 0.5)
        w = jax.random.uniform(kw, (din, dout), jnp.float32, -bound, bound)
        b = jax.random.uniform(kb, (1, dout), jnp.float32, -bound, bound)
        params += [w, b]
    return params, key


def _ref_mlp_f32(x, params):
    w1, b1, w2, b2, w3, b3, w4, b4 = params
    h = jax.nn.relu(x @ w1 + b1)
    h = jax.nn.relu(h @ w2 + b2)
    h = jax.nn.relu(h @ w3 + b3)
    return h @ w4 + b4


def _ref_mlp_bf16(x, params):
    """Reference matching the kernel's bf16-in / f32-accumulate math (unfused)."""
    w1, b1, w2, b2, w3, b3, w4, b4 = params
    cd = jnp.bfloat16
    h = x.astype(cd)
    h = jnp.maximum(jnp.dot(h, w1.astype(cd), preferred_element_type=jnp.float32) + b1, 0.0)
    h = jnp.maximum(jnp.dot(h.astype(cd), w2.astype(cd), preferred_element_type=jnp.float32) + b2, 0.0)
    h = jnp.maximum(jnp.dot(h.astype(cd), w3.astype(cd), preferred_element_type=jnp.float32) + b3, 0.0)
    return jnp.dot(h.astype(cd), w4.astype(cd), preferred_element_type=jnp.float32) + b4


if __name__ == "__main__":
    key = jax.random.PRNGKey(0)
    # Small demo shapes: 2000 points (exercises ragged-N padding + multi-tile
    # grid), 32 input features, hidden 64 per network -> fused hidden width 128.
    N, input_dim, hidden_dim = 2000, 32, 64

    key, kx = jax.random.split(key)
    x = jax.random.normal(kx, (N, input_dim), jnp.float32)

    coarse_params, key = init_nerf_params(key, input_dim, hidden_dim)
    fine_params, key = init_nerf_params(key, input_dim, hidden_dim)

    out_c, out_f = coarse_fine_nerf(x, tuple(coarse_params), tuple(fine_params))
    jax.block_until_ready((out_c, out_f))

    # Correctness: exact-math (bf16-matched, unfused) reference.
    ref_c_bf = _ref_mlp_bf16(x, coarse_params)
    ref_f_bf = _ref_mlp_bf16(x, fine_params)
    assert jnp.allclose(out_c, ref_c_bf, atol=2e-3, rtol=2e-3)
    assert jnp.allclose(out_f, ref_f_bf, atol=2e-3, rtol=2e-3)

    # Sanity: close to the full-f32 reference despite bf16 matmul inputs.
    ref_c = _ref_mlp_f32(x, coarse_params)
    ref_f = _ref_mlp_f32(x, fine_params)
    assert jnp.allclose(out_c, ref_c, atol=5e-2, rtol=5e-2)
    assert jnp.allclose(out_f, ref_f, atol=5e-2, rtol=5e-2)

    print("KERNEL_OK")
</pallas_src>

<mosaic_0001>
module attributes {stable_mosaic.version = 11 : i64} {
  func.func @fused_nerf_kernel(%arg0: i32, %arg1: memref<512x32xf32, #tpu.memory_space<vmem>>, %arg2: memref<32x128xbf16, #tpu.memory_space<vmem>>, %arg3: memref<1x128xf32, #tpu.memory_space<vmem>>, %arg4: memref<128x128xbf16, #tpu.memory_space<vmem>>, %arg5: memref<1x128xf32, #tpu.memory_space<vmem>>, %arg6: memref<128x128xbf16, #tpu.memory_space<vmem>>, %arg7: memref<1x128xf32, #tpu.memory_space<vmem>>, %arg8: memref<128x8xbf16, #tpu.memory_space<vmem>>, %arg9: memref<1x8xf32, #tpu.memory_space<vmem>>, %arg10: memref<8x512xf32, #tpu.memory_space<vmem>>) attributes {dimension_semantics = [#tpu.dimension_semantics<parallel>], iteration_bounds = array<i64: 4>, scalar_prefetch = 0 : i64, scratch_operands = 0 : i64, tpu.core_type = #tpu.core_type<tc>, window_params = [{transform_indices = @transform_0, window_bounds = array<i64: 512, 32>}, {pipeline_mode = #tpu.pipeline_mode<synchronous>, transform_indices = @transform_1, window_bounds = array<i64: 32, 128>}, {pipeline_mode = #tpu.pipeline_mode<synchronous>, transform_indices = @transform_2, window_bounds = array<i64: 1, 128>}, {pipeline_mode = #tpu.pipeline_mode<synchronous>, transform_indices = @transform_3, window_bounds = array<i64: 128, 128>}, {pipeline_mode = #tpu.pipeline_mode<synchronous>, transform_indices = @transform_4, window_bounds = array<i64: 1, 128>}, {pipeline_mode = #tpu.pipeline_mode<synchronous>, transform_indices = @transform_5, window_bounds = array<i64: 128, 128>}, {pipeline_mode = #tpu.pipeline_mode<synchronous>, transform_indices = @transform_6, window_bounds = array<i64: 1, 128>}, {pipeline_mode = #tpu.pipeline_mode<synchronous>, transform_indices = @transform_7, window_bounds = array<i64: 128, 8>}, {pipeline_mode = #tpu.pipeline_mode<synchronous>, transform_indices = @transform_8, window_bounds = array<i64: 1, 8>}, {transform_indices = @transform_9, window_bounds = array<i64: 8, 512>}]} {
    %c0 = arith.constant 0 : index
    %c0_0 = arith.constant 0 : index
    %0 = vector.load %arg1[%c0, %c0_0] : memref<512x32xf32, #tpu.memory_space<vmem>>, vector<512x32xf32>
    %1 = arith.truncf %0 : vector<512x32xf32> to vector<512x32xbf16>
    %c0_1 = arith.constant 0 : index
    %c0_2 = arith.constant 0 : index
    %2 = vector.load %arg2[%c0_1, %c0_2] : memref<32x128xbf16, #tpu.memory_space<vmem>>, vector<32x128xbf16>
    %cst = arith.constant dense<0.000000e+00> : vector<512x128xf32>
    %3 = tpu.matmul %1, %2, %cst {dimension_numbers = #tpu.dot_dimension_numbers<[1], [0], [0], [1], [0, 0, 1, 1], [], []>} : vector<512x32xbf16>, vector<32x128xbf16>, vector<512x128xf32> -> vector<512x128xf32>
    %c0_3 = arith.constant 0 : index
    %c0_4 = arith.constant 0 : index
    %4 = vector.load %arg3[%c0_3, %c0_4] : memref<1x128xf32, #tpu.memory_space<vmem>>, vector<1x128xf32>
    %5 = vector.broadcast %4 : vector<1x128xf32> to vector<512x128xf32>
    %6 = arith.addf %3, %5 : vector<512x128xf32>
    %cst_5 = arith.constant 0.000000e+00 : f32
    %7 = vector.broadcast %cst_5 : f32 to vector<512x128xf32>
    %8 = arith.maximumf %6, %7 : vector<512x128xf32>
    %9 = arith.truncf %8 : vector<512x128xf32> to vector<512x128xbf16>
    %c0_6 = arith.constant 0 : index
    %c0_7 = arith.constant 0 : index
    %10 = vector.load %arg4[%c0_6, %c0_7] : memref<128x128xbf16, #tpu.memory_space<vmem>>, vector<128x128xbf16>
    %cst_8 = arith.constant dense<0.000000e+00> : vector<512x128xf32>
    %11 = tpu.matmul %9, %10, %cst_8 {dimension_numbers = #tpu.dot_dimension_numbers<[1], [0], [0], [1], [0, 0, 1, 1], [], []>} : vector<512x128xbf16>, vector<128x128xbf16>, vector<512x128xf32> -> vector<512x128xf32>
    %c0_9 = arith.constant 0 : index
    %c0_10 = arith.constant 0 : index
    %12 = vector.load %arg5[%c0_9, %c0_10] : memref<1x128xf32, #tpu.memory_space<vmem>>, vector<1x128xf32>
    %13 = vector.broadcast %12 : vector<1x128xf32> to vector<512x128xf32>
    %14 = arith.addf %11, %13 : vector<512x128xf32>
    %cst_11 = arith.constant 0.000000e+00 : f32
    %15 = vector.broadcast %cst_11 : f32 to vector<512x128xf32>
    %16 = arith.maximumf %14, %15 : vector<512x128xf32>
    %17 = arith.truncf %16 : vector<512x128xf32> to vector<512x128xbf16>
    %c0_12 = arith.constant 0 : index
    %c0_13 = arith.constant 0 : index
    %18 = vector.load %arg6[%c0_12, %c0_13] : memref<128x128xbf16, #tpu.memory_space<vmem>>, vector<128x128xbf16>
    %cst_14 = arith.constant dense<0.000000e+00> : vector<512x128xf32>
    %19 = tpu.matmul %17, %18, %cst_14 {dimension_numbers = #tpu.dot_dimension_numbers<[1], [0], [0], [1], [0, 0, 1, 1], [], []>} : vector<512x128xbf16>, vector<128x128xbf16>, vector<512x128xf32> -> vector<512x128xf32>
    %c0_15 = arith.constant 0 : index
    %c0_16 = arith.constant 0 : index
    %20 = vector.load %arg7[%c0_15, %c0_16] : memref<1x128xf32, #tpu.memory_space<vmem>>, vector<1x128xf32>
    %21 = vector.broadcast %20 : vector<1x128xf32> to vector<512x128xf32>
    %22 = arith.addf %19, %21 : vector<512x128xf32>
    %cst_17 = arith.constant 0.000000e+00 : f32
    %23 = vector.broadcast %cst_17 : f32 to vector<512x128xf32>
    %24 = arith.maximumf %22, %23 : vector<512x128xf32>
    %25 = arith.truncf %24 : vector<512x128xf32> to vector<512x128xbf16>
    %c0_18 = arith.constant 0 : index
    %c0_19 = arith.constant 0 : index
    %26 = vector.load %arg8[%c0_18, %c0_19] : memref<128x8xbf16, #tpu.memory_space<vmem>>, vector<128x8xbf16>
    %cst_20 = arith.constant dense<0.000000e+00> : vector<512x8xf32>
    %27 = tpu.matmul %25, %26, %cst_20 {dimension_numbers = #tpu.dot_dimension_numbers<[1], [0], [0], [1], [0, 0, 1, 1], [], []>} : vector<512x128xbf16>, vector<128x8xbf16>, vector<512x8xf32> -> vector<512x8xf32>
    %c0_21 = arith.constant 0 : index
    %c0_22 = arith.constant 0 : index
    %28 = vector.load %arg9[%c0_21, %c0_22] : memref<1x8xf32, #tpu.memory_space<vmem>>, vector<1x8xf32>
    %29 = vector.broadcast %28 : vector<1x8xf32> to vector<512x8xf32>
    %30 = arith.addf %27, %29 : vector<512x8xf32>
    %31 = tpu.transpose %30, [1, 0] : vector<512x8xf32> -> vector<8x512xf32>
    %c0_23 = arith.constant 0 : index
    %c0_24 = arith.constant 0 : index
    %32 = vector.load %arg10[%c0_23, %c0_24] : memref<8x512xf32, #tpu.memory_space<vmem>>, vector<8x512xf32>
    tpu.vector_store %arg10[%c0_23, %c0_24], %31 {strides = array<i32>} : memref<8x512xf32, #tpu.memory_space<vmem>>, vector<8x512xf32>,
    return
  }
  func.func @transform_0(%arg0: i32) -> (i32, i32) {
    %c0_i32 = arith.constant 0 : i32
    %c0_i32_0 = arith.constant 0 : i32
    return %arg0, %c0_i32 : i32, i32
  }
  func.func @transform_1(%arg0: i32) -> (i32, i32) {
    %c0_i32 = arith.constant 0 : i32
    %c0_i32_0 = arith.constant 0 : i32
    %c0_i32_1 = arith.constant 0 : i32
    return %c0_i32, %c0_i32_0 : i32, i32
  }
  func.func @transform_2(%arg0: i32) -> (i32, i32) {
    %c0_i32 = arith.constant 0 : i32
    %c0_i32_0 = arith.constant 0 : i32
    %c0_i32_1 = arith.constant 0 : i32
    return %c0_i32, %c0_i32_0 : i32, i32
  }
  func.func @transform_3(%arg0: i32) -> (i32, i32) {
    %c0_i32 = arith.constant 0 : i32
    %c0_i32_0 = arith.constant 0 : i32
    %c0_i32_1 = arith.constant 0 : i32
    return %c0_i32, %c0_i32_0 : i32, i32
  }
  func.func @transform_4(%arg0: i32) -> (i32, i32) {
    %c0_i32 = arith.constant 0 : i32
    %c0_i32_0 = arith.constant 0 : i32
    %c0_i32_1 = arith.constant 0 : i32
    return %c0_i32, %c0_i32_0 : i32, i32
  }
  func.func @transform_5(%arg0: i32) -> (i32, i32) {
    %c0_i32 = arith.constant 0 : i32
    %c0_i32_0 = arith.constant 0 : i32
    %c0_i32_1 = arith.constant 0 : i32
    return %c0_i32, %c0_i32_0 : i32, i32
  }
  func.func @transform_6(%arg0: i32) -> (i32, i32) {
    %c0_i32 = arith.constant 0 : i32
    %c0_i32_0 = arith.constant 0 : i32
    %c0_i32_1 = arith.constant 0 : i32
    return %c0_i32, %c0_i32_0 : i32, i32
  }
  func.func @transform_7(%arg0: i32) -> (i32, i32) {
    %c0_i32 = arith.constant 0 : i32
    %c0_i32_0 = arith.constant 0 : i32
    %c0_i32_1 = arith.constant 0 : i32
    return %c0_i32, %c0_i32_0 : i32, i32
  }
  func.func @transform_8(%arg0: i32) -> (i32, i32) {
    %c0_i32 = arith.constant 0 : i32
    %c0_i32_0 = arith.constant 0 : i32
    %c0_i32_1 = arith.constant 0 : i32
    return %c0_i32, %c0_i32_0 : i32, i32
  }
  func.func @transform_9(%arg0: i32) -> (i32, i32) {
    %c0_i32 = arith.constant 0 : i32
    %c0_i32_0 = arith.constant 0 : i32
    return %c0_i32, %arg0 : i32, i32
  }
}

</mosaic_0001>

<llo_original>
// kernel: coarse_fine_nerf.1
$region0: #{coarse_fine_nerf.1}
  #allocation0 [shape = 'u32[]', space=smem, size = 0x4, offset = 0x4, fixed_abs, tag = 'smem constant byte address 0x4 - core index']
  #allocation1 [shape = 'u32[144,128]{1,0:T(1,128)}', space=vmem, size = 0x12000, scoped, tag = 'internal scratch']
  %s0 = inlined_call_operand.vmem [shape: f32[2048,32], index: 0, kind: input, shape index: {}]
  %s1 = inlined_call_operand.vmem [shape: bf16[32,128], index: 1, kind: input, shape index: {}]
  %s2 = inlined_call_operand.vmem [shape: f32[1,128], index: 2, kind: input, shape index: {}]
  %s3 = inlined_call_operand.vmem [shape: bf16[128,128], index: 3, kind: input, shape index: {}]
  %s4 = inlined_call_operand.vmem [shape: f32[1,128], index: 4, kind: input, shape index: {}]
  %s5 = inlined_call_operand.vmem [shape: bf16[128,128], index: 5, kind: input, shape index: {}]
  %s6 = inlined_call_operand.vmem [shape: f32[1,128], index: 6, kind: input, shape index: {}]
  %s7 = inlined_call_operand.vmem [shape: bf16[128,8], index: 7, kind: input, shape index: {}]
  %s8 = inlined_call_operand.vmem [shape: f32[1,8], index: 8, kind: input, shape index: {}]
  %s9 = inlined_call_operand.vmem [shape: f32[8,2048], index: 9, kind: output, shape index: {}]
  %s10 = sld [smem:[#allocation0]]
  $region69: #{coarse_fine_nerf.1} parent=0
    _
  %s12 = ssub.s32 1, %s10
  %s13 = scalar_select 0, %s12, %s10
  loop: start=0, step=1, limit=6
  $region2: #{coarse_fine_nerf.1} parent=0 // loop_pre_header
    _
  $region3: #{coarse_fine_nerf.1} parent=0 // loop_header
    %s15 = sphi 0, %s19
    %p16 = scmp.ge.s32.totalorder %s15, 6
    %s25 = sphi 0, %s27
    %s28 = sphi 0, %s25
    %s29 = sphi 0, %s28
    %s45 = sphi 0, %s29
    %s49 = sphi 0, %s49
    %s51 = sphi 0, %s49
    %s52 = sphi 0, %s51
    %s66 = sphi 0, %s52
    %s70 = sphi 0, %s70
    %s72 = sphi 0, %s70
    %s73 = sphi 0, %s72
    %s87 = sphi 0, %s73
    %s91 = sphi 0, %s91
    %s93 = sphi 0, %s91
    %s94 = sphi 0, %s93
    %s108 = sphi 0, %s94
    %s112 = sphi 0, %s112
    %s114 = sphi 0, %s112
    %s115 = sphi 0, %s114
    %s129 = sphi 0, %s115
    %s133 = sphi 0, %s133
    %s135 = sphi 0, %s133
    %s136 = sphi 0, %s135
    %s150 = sphi 0, %s136
    %s154 = sphi 0, %s154
    %s156 = sphi 0, %s154
    %s157 = sphi 0, %s156
    %s171 = sphi 0, %s157
    %s175 = sphi 0, %s175
    %s177 = sphi 0, %s175
    %s178 = sphi 0, %s177
    %s192 = sphi 0, %s178
    %s196 = sphi 0, %s196
    %s198 = sphi 0, %s196
    %s199 = sphi 0, %s198
    %s213 = sphi 0, %s199
    %s219 = sphi 0, %s221
    %s222 = sphi 0, %s219
    %s223 = sphi 0, %s222
    %s239 = sphi 0, %s223
  $region4: #{coarse_fine_nerf.1} parent=0 // loop_header_branch
    %18 = sbr.rel (%p16) target = $region8
  $region5: #{coarse_fine_nerf.1} parent=0 // loop_body
    %s20 = ssub.s32 %s15, 1
    %s21 = ssub.s32 %s15, 2
    %s22 = sadd.s32 %s15, 1
    %s23 = ssub.s32 %s15, %s22
    %p24 = scmp.eq.s32.totalorder %s23, 0
    %s26 = sadd.s32 %s25, 1
    %s27 = scalar_select %p24, %s25, %s26
    %p30 = pneg %p24
    %p31 = scmp.eq.s32.totalorder %s15, 3
    %p32 = por %p30, %p31
    %p33 = scmp.ne.s32.totalorder %s25, %s28
    %p34 = scmp.eq.s32.totalorder %s15, 0
    %p35 = por %p33, %p34
    %p36 = scmp.ne.s32.totalorder %s25, %s28
    %p37 = scmp.eq.s32.totalorder %s20, 3
    %p38 = por %p36, %p37
    %p39 = scmp.ne.s32.totalorder %s28, %s29
    %p40 = scmp.eq.s32.totalorder %s20, 0
    %p41 = por %p39, %p40
    %p42 = scmp.ne.s32.totalorder %s28, %s29
    %p43 = scmp.eq.s32.totalorder %s21, 3
    %p44 = por %p42, %p43
    %p46 = scmp.ne.s32.totalorder %s29, %s45
    %p47 = scmp.eq.s32.totalorder %s21, 0
    %p48 = por %p46, %p47
    %s50 = sadd.s32 %s49, 1
    %p53 = scmp.eq.s32.totalorder %s15, 3
    %p54 = scmp.ne.s32.totalorder %s49, %s51
    %p55 = scmp.eq.s32.totalorder %s15, 0
    %p56 = por %p54, %p55
    %p57 = scmp.ne.s32.totalorder %s49, %s51
    %p58 = scmp.eq.s32.totalorder %s20, 3
    %p59 = por %p57, %p58
    %p60 = scmp.ne.s32.totalorder %s51, %s52
    %p61 = scmp.eq.s32.totalorder %s20, 0
    %p62 = por %p60, %p61
    %p63 = scmp.ne.s32.totalorder %s51, %s52
    %p64 = scmp.eq.s32.totalorder %s21, 3
    %p65 = por %p63, %p64
    %p67 = scmp.ne.s32.totalorder %s52, %s66
    %p68 = scmp.eq.s32.totalorder %s21, 0
    %p69 = por %p67, %p68
    %s71 = sadd.s32 %s70, 1
    %p74 = scmp.eq.s32.totalorder %s15, 3
    %p75 = scmp.ne.s32.totalorder %s70, %s72
    %p76 = scmp.eq.s32.totalorder %s15, 0
    %p77 = por %p75, %p76
    %p78 = scmp.ne.s32.totalorder %s70, %s72
    %p79 = scmp.eq.s32.totalorder %s20, 3
    %p80 = por %p78, %p79
    %p81 = scmp.ne.s32.totalorder %s72, %s73
    %p82 = scmp.eq.s32.totalorder %s20, 0
    %p83 = por %p81, %p82
    %p84 = scmp.ne.s32.totalorder %s72, %s73
    %p85 = scmp.eq.s32.totalorder %s21, 3
    %p86 = por %p84, %p85
    %p88 = scmp.ne.s32.totalorder %s73, %s87
    %p89 = scmp.eq.s32.totalorder %s21, 0
    %p90 = por %p88, %p89
    %s92 = sadd.s32 %s91, 1
    %p95 = scmp.eq.s32.totalorder %s15, 3
    %p96 = scmp.ne.s32.totalorder %s91, %s93
    %p97 = scmp.eq.s32.totalorder %s15, 0
    %p98 = por %p96, %p97
    %p99 = scmp.ne.s32.totalorder %s91, %s93
    %p100 = scmp.eq.s32.totalorder %s20, 3
    %p101 = por %p99, %p100
    %p102 = scmp.ne.s32.totalorder %s93, %s94
    %p103 = scmp.eq.s32.totalorder %s20, 0
    %p104 = por %p102, %p103
    %p105 = scmp.ne.s32.totalorder %s93, %s94
    %p106 = scmp.eq.s32.totalorder %s21, 3
    %p107 = por %p105, %p106
    %p109 = scmp.ne.s32.totalorder %s94, %s108
    %p110 = scmp.eq.s32.totalorder %s21, 0
    %p111 = por %p109, %p110
    %s113 = sadd.s32 %s112, 1
    %p116 = scmp.eq.s32.totalorder %s15, 3
    %p117 = scmp.ne.s32.totalorder %s112, %s114
    %p118 = scmp.eq.s32.totalorder %s15, 0
    %p119 = por %p117, %p118
    %p120 = scmp.ne.s32.totalorder %s112, %s114
    %p121 = scmp.eq.s32.totalorder %s20, 3
    %p122 = por %p120, %p121
    %p123 = scmp.ne.s32.totalorder %s114, %s115
    %p124 = scmp.eq.s32.totalorder %s20, 0
    %p125 = por %p123, %p124
    %p126 = scmp.ne.s32.totalorder %s114, %s115
    %p127 = scmp.eq.s32.totalorder %s21, 3
    %p128 = por %p126, %p127
    %p130 = scmp.ne.s32.totalorder %s115, %s129
    %p131 = scmp.eq.s32.totalorder %s21, 0
    %p132 = por %p130, %p131
    %s134 = sadd.s32 %s133, 1
    %p137 = scmp.eq.s32.totalorder %s15, 3
    %p138 = scmp.ne.s32.totalorder %s133, %s135
    %p139 = scmp.eq.s32.totalorder %s15, 0
    %p140 = por %p138, %p139
    %p141 = scmp.ne.s32.totalorder %s133, %s135
    %p142 = scmp.eq.s32.totalorder %s20, 3
    %p143 = por %p141, %p142
    %p144 = scmp.ne.s32.totalorder %s135, %s136
    %p145 = scmp.eq.s32.totalorder %s20, 0
    %p146 = por %p144, %p145
    %p147 = scmp.ne.s32.totalorder %s135, %s136
    %p148 = scmp.eq.s32.totalorder %s21, 3
    %p149 = por %p147, %p148
    %p151 = scmp.ne.s32.totalorder %s136, %s150
    %p152 = scmp.eq.s32.totalorder %s21, 0
    %p153 = por %p151, %p152
    %s155 = sadd.s32 %s154, 1
    %p158 = scmp.eq.s32.totalorder %s15, 3
    %p159 = scmp.ne.s32.totalorder %s154, %s156
    %p160 = scmp.eq.s32.totalorder %s15, 0
    %p161 = por %p159, %p160
    %p162 = scmp.ne.s32.totalorder %s154, %s156
    %p163 = scmp.eq.s32.totalorder %s20, 3
    %p164 = por %p162, %p163
    %p165 = scmp.ne.s32.totalorder %s156, %s157
    %p166 = scmp.eq.s32.totalorder %s20, 0
    %p167 = por %p165, %p166
    %p168 = scmp.ne.s32.totalorder %s156, %s157
    %p169 = scmp.eq.s32.totalorder %s21, 3
    %p170 = por %p168, %p169
    %p172 = scmp.ne.s32.totalorder %s157, %s171
    %p173 = scmp.eq.s32.totalorder %s21, 0
    %p174 = por %p172, %p173
    %s176 = sadd.s32 %s175, 1
    %p179 = scmp.eq.s32.totalorder %s15, 3
    %p180 = scmp.ne.s32.totalorder %s175, %s177
    %p181 = scmp.eq.s32.totalorder %s15, 0
    %p182 = por %p180, %p181
    %p183 = scmp.ne.s32.totalorder %s175, %s177
    %p184 = scmp.eq.s32.totalorder %s20, 3
    %p185 = por %p183, %p184
    %p186 = scmp.ne.s32.totalorder %s177, %s178
    %p187 = scmp.eq.s32.totalorder %s20, 0
    %p188 = por %p186, %p187
    %p189 = scmp.ne.s32.totalorder %s177, %s178
    %p190 = scmp.eq.s32.totalorder %s21, 3
    %p191 = por %p189, %p190
    %p193 = scmp.ne.s32.totalorder %s178, %s192
    %p194 = scmp.eq.s32.totalorder %s21, 0
    %p195 = por %p193, %p194
    %s197 = sadd.s32 %s196, 1
    %p200 = scmp.eq.s32.totalorder %s15, 3
    %p201 = scmp.ne.s32.totalorder %s196, %s198
    %p202 = scmp.eq.s32.totalorder %s15, 0
    %p203 = por %p201, %p202
    %p204 = scmp.ne.s32.totalorder %s196, %s198
    %p205 = scmp.eq.s32.totalorder %s20, 3
    %p206 = por %p204, %p205
    %p207 = scmp.ne.s32.totalorder %s198, %s199
    %p208 = scmp.eq.s32.totalorder %s20, 0
    %p209 = por %p207, %p208
    %p210 = scmp.ne.s32.totalorder %s198, %s199
    %p211 = scmp.eq.s32.totalorder %s21, 3
    %p212 = por %p210, %p211
    %p214 = scmp.ne.s32.totalorder %s199, %s213
    %p215 = scmp.eq.s32.totalorder %s21, 0
    %p216 = por %p214, %p215
    %s217 = ssub.s32 %s15, %s22
    %p218 = scmp.eq.s32.totalorder %s217, 0
    %s220 = sadd.s32 %s219, 1
    %s221 = scalar_select %p218, %s219, %s220
    %p224 = pneg %p218
    %p225 = scmp.eq.s32.totalorder %s15, 3
    %p226 = por %p224, %p225
    %p227 = scmp.ne.s32.totalorder %s219, %s222
    %p228 = scmp.eq.s32.totalorder %s15, 0
    %p229 = por %p227, %p228
    %p230 = scmp.ne.s32.totalorder %s219, %s222
    %p231 = scmp.eq.s32.totalorder %s20, 3
    %p232 = por %p230, %p231
    %p233 = scmp.ne.s32.totalorder %s222, %s223
    %p234 = scmp.eq.s32.totalorder %s20, 0
    %p235 = por %p233, %p234
    %p236 = scmp.ne.s32.totalorder %s222, %s223
    %p237 = scmp.eq.s32.totalorder %s21, 3
    %p238 = por %p236, %p237
    %p240 = scmp.ne.s32.totalorder %s223, %s239
    %p241 = scmp.eq.s32.totalorder %s21, 0
    %p242 = por %p240, %p241
    %p243 = scmp.le.s32.totalorder 1, %s15
    %p244 = scmp.lt.s32.totalorder %s15, 5
    %p245 = pnand %p243, %p244
    %p246 = pneg %p245
    // Predicated region
    $region9: #{coarse_fine_nerf.1} parent=5 // pred_check
      _
    $region10: #{coarse_fine_nerf.1} parent=5 // pred_check_branch
      %248 = sbr.rel (%p245) target = $region12
    $region11: #{coarse_fine_nerf.1} parent=5 // pred_region
      %s249 = ssub.s32 %s15, 1
      // Predicated region
      $region13: #{coarse_fine_nerf.1} parent=11 // pred_check
        %p250 = pneg %p62
      $region14: #{coarse_fine_nerf.1} parent=11 // pred_check_branch
        %252 = sbr.rel (%p250) target = $region16
      $region15: #{coarse_fine_nerf.1} parent=11 // pred_region
        _
      $region16: #{coarse_fine_nerf.1} parent=11 // pred_fallthru
        _
      // Predicated region
      $region17: #{coarse_fine_nerf.1} parent=11 // pred_check
        %p253 = pneg %p83
      $region18: #{coarse_fine_nerf.1} parent=11 // pred_check_branch
        %255 = sbr.rel (%p253) target = $region20
      $region19: #{coarse_fine_nerf.1} parent=11 // pred_region
        _
      $region20: #{coarse_fine_nerf.1} parent=11 // pred_fallthru
        _
      // Predicated region
      $region21: #{coarse_fine_nerf.1} parent=11 // pred_check
        %p256 = pneg %p104
      $region22: #{coarse_fine_nerf.1} parent=11 // pred_check_branch
        %258 = sbr.rel (%p256) target = $region24
      $region23: #{coarse_fine_nerf.1} parent=11 // pred_region
        _
      $region24: #{coarse_fine_nerf.1} parent=11 // pred_fallthru
        _
      // Predicated region
      $region25: #{coarse_fine_nerf.1} parent=11 // pred_check
        %p259 = pneg %p125
      $region26: #{coarse_fine_nerf.1} parent=11 // pred_check_branch
        %261 = sbr.rel (%p259) target = $region28
      $region27: #{coarse_fine_nerf.1} parent=11 // pred_region
        _
      $region28: #{coarse_fine_nerf.1} parent=11 // pred_fallthru
        _
      // Predicated region
      $region29: #{coarse_fine_nerf.1} parent=11 // pred_check
        %p262 = pneg %p146
      $region30: #{coarse_fine_nerf.1} parent=11 // pred_check_branch
        %264 = sbr.rel (%p262) target = $region32
      $region31: #{coarse_fine_nerf.1} parent=11 // pred_region
        _
      $region32: #{coarse_fine_nerf.1} parent=11 // pred_fallthru
        _
      // Predicated region
      $region33: #{coarse_fine_nerf.1} parent=11 // pred_check
        %p265 = pneg %p167
      $region34: #{coarse_fine_nerf.1} parent=11 // pred_check_branch
        %267 = sbr.rel (%p265) target = $region36
      $region35: #{coarse_fine_nerf.1} parent=11 // pred_region
        _
      $region36: #{coarse_fine_nerf.1} parent=11 // pred_fallthru
        _
      // Predicated region
      $region37: #{coarse_fine_nerf.1} parent=11 // pred_check
        %p268 = pneg %p188
      $region38: #{coarse_fine_nerf.1} parent=11 // pred_check_branch
        %270 = sbr.rel (%p268) target = $region40
      $region39: #{coarse_fine_nerf.1} parent=11 // pred_region
        _
      $region40: #{coarse_fine_nerf.1} parent=11 // pred_fallthru
        _
      // Predicated region
      $region41: #{coarse_fine_nerf.1} parent=11 // pred_check
        %p271 = pneg %p209
      $region42: #{coarse_fine_nerf.1} parent=11 // pred_check_branch
        %273 = sbr.rel (%p271) target = $region44
      $region43: #{coarse_fine_nerf.1} parent=11 // pred_region
        _
      $region44: #{coarse_fine_nerf.1} parent=11 // pred_fallthru
        _
    $region12: #{coarse_fine_nerf.1} parent=5 // pred_fallthru
      _
    %p274 = scmp.lt.s32.totalorder %s15, 4
    // Predicated region
    $region45: #{coarse_fine_nerf.1} parent=5 // pred_check
      %p275 = pneg %p274
    $region46: #{coarse_fine_nerf.1} parent=5 // pred_check_branch
      %277 = sbr.rel (%p275) target = $region48
    $region47: #{coarse_fine_nerf.1} parent=5 // pred_region
      // Predicated region
      $region49: #{coarse_fine_nerf.1} parent=47 // pred_check
        %p278 = pneg %p35
      $region50: #{coarse_fine_nerf.1} parent=47 // pred_check_branch
        %280 = sbr.rel (%p278) target = $region52
      $region51: #{coarse_fine_nerf.1} parent=47 // pred_region
        %s281 = smul.u32 64, %s15
        %p282 = scmp.lt.s32.totalorder %s281, 255
        %s283 = scalar_select %p282, %s281, 255
        %s284 = smul.addr %s283, 8
        %s285 = scalar_lea.vmem %s0, %s284
        %s286 = smul.u32 64, %s15
      $region52: #{coarse_fine_nerf.1} parent=47 // pred_fallthru
        _
    $region48: #{coarse_fine_nerf.1} parent=5 // pred_fallthru
      _
    %p287 = scmp.le.s32.totalorder 1, %s15
    %p288 = scmp.lt.s32.totalorder %s15, 5
    %p289 = pnand %p287, %p288
    %p290 = pneg %p289
    // Predicated region
    $region53: #{coarse_fine_nerf.1} parent=5 // pred_check
      _
    $region54: #{coarse_fine_nerf.1} parent=5 // pred_check_branch
      %292 = sbr.rel (%p289) target = $region56
    $region55: #{coarse_fine_nerf.1} parent=5 // pred_region
      %s293 = ssub.s32 %s15, 1
      %s294 = smul.u32 64, %s20
      %p295 = scmp.lt.s32.totalorder %s294, 255
      %s296 = scalar_select %p295, %s294, 255
      %s297 = smul.addr %s296, 8
      %s298 = scalar_lea.vmem %s0, %s297
      %p299 = pneg %p41
      %p300 = pneg %p38
      %p301 = pneg %p62
      %p302 = pneg %p59
      %p303 = pneg %p83
      %p304 = pneg %p80
      %p305 = pneg %p104
      %p306 = pneg %p101
      %p307 = pneg %p125
      %p308 = pneg %p122
      %p309 = pneg %p146
      %p310 = pneg %p143
      %p311 = pneg %p167
      %p312 = pneg %p164
      %p313 = pneg %p188
      %p314 = pneg %p185
      %p315 = pneg %p209
      %p316 = pneg %p206
      %p317 = pneg %p235
      %p318 = pneg %p232
      %s319 = smul.u32 4, %s20
      %p320 = scmp.lt.s32.totalorder %s319, 15
      %s321 = scalar_select %p320, %s319, 15
      %s322 = smul.addr %s321, 8
      %s323 = scalar_lea.vmem %s9, %s322
      %s324 = smul.u32 64, %s20
      %p325 = scmp.lt.s32.totalorder %s324, 255
      %s326 = scalar_select %p325, %s324, 255
      %s327 = smul.addr %s326, 8
      %s328 = scalar_lea.vmem %s0, %s327
      %s329 = smul.u32 64, %s20
      %s330 = smul.u32 4, %s20
      %p331 = scmp.lt.s32.totalorder %s330, 15
      %s332 = scalar_select %p331, %s330, 15
      %s333 = smul.addr %s332, 8
      %s334 = scalar_lea.vmem %s9, %s333
      %s335 = smul.u32 4, %s20
      %v337 = vld [vmem:[%s328] sm:$0xff]
      %v338 = vld [vmem:[%s328 + $0x8] sm:$0xff]
      %v339 = vld [vmem:[%s328 + $0x10] sm:$0xff]
      %v340 = vld [vmem:[%s328 + $0x18] sm:$0xff]
      %v341 = vld [vmem:[%s328 + $0x20] sm:$0xff]
      %v342 = vld [vmem:[%s328 + $0x28] sm:$0xff]
      %v343 = vld [vmem:[%s328 + $0x30] sm:$0xff]
      %v344 = vld [vmem:[%s328 + $0x38] sm:$0xff]
      %v345 = vld [vmem:[%s328 + $0x40] sm:$0xff]
      %v346 = vld [vmem:[%s328 + $0x48] sm:$0xff]
      %v347 = vld [vmem:[%s328 + $0x50] sm:$0xff]
      %v348 = vld [vmem:[%s328 + $0x58] sm:$0xff]
      %v349 = vld [vmem:[%s328 + $0x60] sm:$0xff]
      %v350 = vld [vmem:[%s328 + $0x68] sm:$0xff]
      %v351 = vld [vmem:[%s328 + $0x70] sm:$0xff]
      %v352 = vld [vmem:[%s328 + $0x78] sm:$0xff]
      %v353 = vld [vmem:[%s328 + $0x80] sm:$0xff]
      %v354 = vld [vmem:[%s328 + $0x88] sm:$0xff]
      %v355 = vld [vmem:[%s328 + $0x90] sm:$0xff]
      %v356 = vld [vmem:[%s328 + $0x98] sm:$0xff]
      %v357 = vld [vmem:[%s328 + $0xa0] sm:$0xff]
      %v358 = vld [vmem:[%s328 + $0xa8] sm:$0xff]
      %v359 = vld [vmem:[%s328 + $0xb0] sm:$0xff]
      %v360 = vld [vmem:[%s328 + $0xb8] sm:$0xff]
      %v361 = vld [vmem:[%s328 + $0xc0] sm:$0xff]
      %v362 = vld [vmem:[%s328 + $0xc8] sm:$0xff]
      %v363 = vld [vmem:[%s328 + $0xd0] sm:$0xff]
      %v364 = vld [vmem:[%s328 + $0xd8] sm:$0xff]
      %v365 = vld [vmem:[%s328 + $0xe0] sm:$0xff]
      %v366 = vld [vmem:[%s328 + $0xe8] sm:$0xff]
      %v367 = vld [vmem:[%s328 + $0xf0] sm:$0xff]
      %v368 = vld [vmem:[%s328 + $0xf8] sm:$0xff]
      %v369 = vld [vmem:[%s328 + $0x100] sm:$0xff]
      %v370 = vld [vmem:[%s328 + $0x108] sm:$0xff]
      %v371 = vld [vmem:[%s328 + $0x110] sm:$0xff]
      %v372 = vld [vmem:[%s328 + $0x118] sm:$0xff]
      %v373 = vld [vmem:[%s328 + $0x120] sm:$0xff]
      %v374 = vld [vmem:[%s328 + $0x128] sm:$0xff]
      %v375 = vld [vmem:[%s328 + $0x130] sm:$0xff]
      %v376 = vld [vmem:[%s328 + $0x138] sm:$0xff]
      %v377 = vld [vmem:[%s328 + $0x140] sm:$0xff]
      %v378 = vld [vmem:[%s328 + $0x148] sm:$0xff]
      %v379 = vld [vmem:[%s328 + $0x150] sm:$0xff]
      %v380 = vld [vmem:[%s328 + $0x158] sm:$0xff]
      %v381 = vld [vmem:[%s328 + $0x160] sm:$0xff]
      %v382 = vld [vmem:[%s328 + $0x168] sm:$0xff]
      %v383 = vld [vmem:[%s328 + $0x170] sm:$0xff]
      %v384 = vld [vmem:[%s328 + $0x178] sm:$0xff]
      %v385 = vld [vmem:[%s328 + $0x180] sm:$0xff]
      %v386 = vld [vmem:[%s328 + $0x188] sm:$0xff]
      %v387 = vld [vmem:[%s328 + $0x190] sm:$0xff]
      %v388 = vld [vmem:[%s328 + $0x198] sm:$0xff]
      %v389 = vld [vmem:[%s328 + $0x1a0] sm:$0xff]
      %v390 = vld [vmem:[%s328 + $0x1a8] sm:$0xff]
      %v391 = vld [vmem:[%s328 + $0x1b0] sm:$0xff]
      %v392 = vld [vmem:[%s328 + $0x1b8] sm:$0xff]
      %v393 = vld [vmem:[%s328 + $0x1c0] sm:$0xff]
      %v394 = vld [vmem:[%s328 + $0x1c8] sm:$0xff]
      %v395 = vld [vmem:[%s328 + $0x1d0] sm:$0xff]
      %v396 = vld [vmem:[%s328 + $0x1d8] sm:$0xff]
      %v397 = vld [vmem:[%s328 + $0x1e0] sm:$0xff]
      %v398 = vld [vmem:[%s328 + $0x1e8] sm:$0xff]
      %v399 = vld [vmem:[%s328 + $0x1f0] sm:$0xff]
      %v400 = vld [vmem:[%s328 + $0x1f8] sm:$0xff]
      %v401 = vpack.c.bf16 %v338, %v337
      %v402 = vpack.c.bf16 %v340, %v339
      %v403 = vpack.c.bf16 %v342, %v341
      %v404 = vpack.c.bf16 %v344, %v343
      %v405 = vpack.c.bf16 %v346, %v345
      %v406 = vpack.c.bf16 %v348, %v347
      %v407 = vpack.c.bf16 %v350, %v349
      %v408 = vpack.c.bf16 %v352, %v351
      %v409 = vpack.c.bf16 %v354, %v353
      %v410 = vpack.c.bf16 %v356, %v355
      %v411 = vpack.c.bf16 %v358, %v357
      %v412 = vpack.c.bf16 %v360, %v359
      %v413 = vpack.c.bf16 %v362, %v361
      %v414 = vpack.c.bf16 %v364, %v363
      %v415 = vpack.c.bf16 %v366, %v365
      %v416 = vpack.c.bf16 %v368, %v367
      %v417 = vpack.c.bf16 %v370, %v369
      %v418 = vpack.c.bf16 %v372, %v371
      %v419 = vpack.c.bf16 %v374, %v373
      %v420 = vpack.c.bf16 %v376, %v375
      %v421 = vpack.c.bf16 %v378, %v377
      %v422 = vpack.c.bf16 %v380, %v379
      %v423 = vpack.c.bf16 %v382, %v381
      %v424 = vpack.c.bf16 %v384, %v383
      %v425 = vpack.c.bf16 %v386, %v385
      %v426 = vpack.c.bf16 %v388, %v387
      %v427 = vpack.c.bf16 %v390, %v389
      %v428 = vpack.c.bf16 %v392, %v391
      %v429 = vpack.c.bf16 %v394, %v393
      %v430 = vpack.c.bf16 %v396, %v395
      %v431 = vpack.c.bf16 %v398, %v397
      %v432 = vpack.c.bf16 %v400, %v399
      %v433 = vld [vmem:[%s1] sm:$0xf]
      %v434 = vld [vmem:[%s1 + $0x4] sm:$0xf]
      %v435 = vld [vmem:[%s1 + $0x8] sm:$0xf]
      %v436 = vld [vmem:[%s1 + $0xc] sm:$0xf]
      %v437 = vld [vmem:[%s2] sm:$0x1]
      %v439 = vlaneseq
      %v440 = vshrl.u32 %v439, 7
      %v441 = vsub.s32 0, %v440
      %v442 = vrot.slane %v437, %v441
      %v448 = vunpack.c.l.b16 %v433
      %v449 = vunpack.c.l.b16 %v434
      %v450 = vunpack.c.l.b16 %v435
      %v451 = vunpack.c.l.b16 %v436
      %v452 = vpack.c.b16 %v449, %v448
      %v453 = vpack.c.b16 %v451, %v450
      %vm456 = vcmask 261120
      %v458 = vsel %vm456, %v401, 0
      %v461 = vsel %vm456, %v402, 0
      %v464 = vsel %vm456, %v403, 0
      %v467 = vsel %vm456, %v404, 0
      %v470 = vsel %vm456, %v405, 0
      %v473 = vsel %vm456, %v406, 0
      %v476 = vsel %vm456, %v407, 0
      %v479 = vsel %vm456, %v408, 0
      %v482 = vsel %vm456, %v409, 0
      %v485 = vsel %vm456, %v410, 0
      %v488 = vsel %vm456, %v411, 0
      %v491 = vsel %vm456, %v412, 0
      %v494 = vsel %vm456, %v413, 0
      %v497 = vsel %vm456, %v414, 0
      %v500 = vsel %vm456, %v415, 0
      %v503 = vsel %vm456, %v416, 0
      %v506 = vsel %vm456, %v417, 0
      %v509 = vsel %vm456, %v418, 0
      %v512 = vsel %vm456, %v419, 0
      %v515 = vsel %vm456, %v420, 0
      %v518 = vsel %vm456, %v421, 0
      %v521 = vsel %vm456, %v422, 0
      %v524 = vsel %vm456, %v423, 0
      %v527 = vsel %vm456, %v424, 0
      %v530 = vsel %vm456, %v425, 0
      %v533 = vsel %vm456, %v426, 0
      %v536 = vsel %vm456, %v427, 0
      %v539 = vsel %vm456, %v428, 0
      %v542 = vsel %vm456, %v429, 0
      %v545 = vsel %vm456, %v430, 0
      %v548 = vsel %vm456, %v431, 0
      %v551 = vsel %vm456, %v432, 0
      %553 = vmatprep.subr.bf16.mxu0 0
      %554 = vmatpush1.bf16.msra.mxu0 0
      %555 = vmatprep.subr.bf16.mxu0 0
      %556 = vmatpush1.bf16.msra.mxu0 0
      %557 = vmatprep.subr.bf16.mxu0 0
      %558 = vmatpush1.bf16.msra.mxu0 0
      %559 = vmatprep.subr.bf16.mxu0 0
      %560 = vmatpush1.bf16.msra.mxu0 0
      %561 = vmatprep.subr.bf16.mxu0 0
      %562 = vmatpush1.bf16.msra.mxu0 0
      %563 = vmatprep.subr.bf16.mxu0 0
      %564 = vmatpush1.bf16.msra.mxu0 0
      %565 = vmatprep.subr.bf16.mxu0 0
      %566 = vmatpush1.bf16.msra.mxu0 %v453
      %567 = vmatprep.subr.bf16.mxu0 0
      %568 = vmatpush1.bf16.msra.mxu0 %v452
      %569 = vmatprep.subr.bf16.mxu0 0
      %570 = vmatpush2.bf16.msra.mxu0 0
      %571 = vmatprep.subr.bf16.mxu0 0
      %572 = vmatpush2.bf16.msra.mxu0 0
      %573 = vmatprep.subr.bf16.mxu0 0
      %574 = vmatpush2.bf16.msra.mxu0 0
      %575 = vmatprep.subr.bf16.mxu0 0
      %576 = vmatpush2.bf16.msra.mxu0 0
      %577 = vmatprep.subr.bf16.mxu0 0
      %578 = vmatpush2.bf16.msra.mxu0 0
      %579 = vmatprep.subr.bf16.mxu0 0
      %580 = vmatpush2.bf16.msra.mxu0 0
      %581 = vmatprep.subr.bf16.mxu0 0
      %582 = vmatpush2.bf16.msra.mxu0 0
      %583 = vmatprep.subr.bf16.mxu0 0
      %584 = vmatpush2.bf16.msra.mxu0 0
      %585 = vmatprep.mubr.bf16.mxu0 0
      %586 = vmatmul.mubr.bf16.gmra.mxu0 %v458
      %v587 = vpop.f32.mrf.mxu0
      %v588 = vadd.f32 %v442, %v587
      %v589 = vpop.f32.mrf.mxu0
      %v590 = vpop.f32.mrf.mxu0
      %v591 = vadd.f32 %v442, %v590
      %v592 = vpop.f32.mrf.mxu0
      %593 = vmatprep.mubr.bf16.mxu0 0
      %594 = vmatmul.mubr.bf16.gmra.mxu0 %v461
      %v595 = vpop.f32.mrf.mxu0
      %v596 = vadd.f32 %v442, %v595
      %v597 = vpop.f32.mrf.mxu0
      %v598 = vpop.f32.mrf.mxu0
      %v599 = vadd.f32 %v442, %v598
      %v600 = vpop.f32.mrf.mxu0
      %601 = vmatprep.mubr.bf16.mxu0 0
      %602 = vmatmul.mubr.bf16.gmra.mxu0 %v464
      %v603 = vpop.f32.mrf.mxu0
      %v604 = vadd.f32 %v442, %v603
      %v605 = vpop.f32.mrf.mxu0
      %v606 = vpop.f32.mrf.mxu0
      %v607 = vadd.f32 %v442, %v606
      %v608 = vpop.f32.mrf.mxu0
      %609 = vmatprep.mubr.bf16.mxu0 0
      %610 = vmatmul.mubr.bf16.gmra.mxu0 %v467
      %v611 = vpop.f32.mrf.mxu0
      %v612 = vadd.f32 %v442, %v611
      %v613 = vpop.f32.mrf.mxu0
      %v614 = vpop.f32.mrf.mxu0
      %v615 = vadd.f32 %v442, %v614
      %v616 = vpop.f32.mrf.mxu0
      %617 = vmatprep.mubr.bf16.mxu0 0
      %618 = vmatmul.mubr.bf16.gmra.mxu0 %v470
      %v619 = vpop.f32.mrf.mxu0
      %v620 = vadd.f32 %v442, %v619
      %v621 = vpop.f32.mrf.mxu0
      %v622 = vpop.f32.mrf.mxu0
      %v623 = vadd.f32 %v442, %v622
      %v624 = vpop.f32.mrf.mxu0
      %625 = vmatprep.mubr.bf16.mxu0 0
      %626 = vmatmul.mubr.bf16.gmra.mxu0 %v473
      %v627 = vpop.f32.mrf.mxu0
      %v628 = vadd.f32 %v442, %v627
      %v629 = vpop.f32.mrf.mxu0
      %v630 = vpop.f32.mrf.mxu0
      %v631 = vadd.f32 %v442, %v630
      %v632 = vpop.f32.mrf.mxu0
      %633 = vmatprep.mubr.bf16.mxu0 0
      %634 = vmatmul.mubr.bf16.gmra.mxu0 %v476
      %v635 = vpop.f32.mrf.mxu0
      %v636 = vadd.f32 %v442, %v635
      %v637 = vpop.f32.mrf.mxu0
      %v638 = vpop.f32.mrf.mxu0
      %v639 = vadd.f32 %v442, %v638
      %v640 = vpop.f32.mrf.mxu0
      %641 = vmatprep.mubr.bf16.mxu0 0
      %642 = vmatmul.mubr.bf16.gmra.mxu0 %v479
      %v643 = vpop.f32.mrf.mxu0
      %v644 = vadd.f32 %v442, %v643
      %v645 = vpop.f32.mrf.mxu0
      %v646 = vpop.f32.mrf.mxu0
      %v647 = vadd.f32 %v442, %v646
      %v648 = vpop.f32.mrf.mxu0
      %649 = vmatprep.mubr.bf16.mxu0 0
      %650 = vmatmul.mubr.bf16.gmra.mxu0 %v482
      %v651 = vpop.f32.mrf.mxu0
      %v652 = vadd.f32 %v442, %v651
      %v653 = vpop.f32.mrf.mxu0
      %v654 = vpop.f32.mrf.mxu0
      %v655 = vadd.f32 %v442, %v654
      %v656 = vpop.f32.mrf.mxu0
      %657 = vmatprep.mubr.bf16.mxu0 0
      %658 = vmatmul.mubr.bf16.gmra.mxu0 %v485
      %v659 = vpop.f32.mrf.mxu0
      %v660 = vadd.f32 %v442, %v659
      %v661 = vpop.f32.mrf.mxu0
      %v662 = vpop.f32.mrf.mxu0
      %v663 = vadd.f32 %v442, %v662
      %v664 = vpop.f32.mrf.mxu0
      %665 = vmatprep.mubr.bf16.mxu0 0
      %666 = vmatmul.mubr.bf16.gmra.mxu0 %v488
      %v667 = vpop.f32.mrf.mxu0
      %v668 = vadd.f32 %v442, %v667
      %v669 = vpop.f32.mrf.mxu0
      %v670 = vpop.f32.mrf.mxu0
      %v671 = vadd.f32 %v442, %v670
      %v672 = vpop.f32.mrf.mxu0
      %673 = vmatprep.mubr.bf16.mxu0 0
      %674 = vmatmul.mubr.bf16.gmra.mxu0 %v491
      %v675 = vpop.f32.mrf.mxu0
      %v676 = vadd.f32 %v442, %v675
      %v677 = vpop.f32.mrf.mxu0
      %v678 = vpop.f32.mrf.mxu0
      %v679 = vadd.f32 %v442, %v678
      %v680 = vpop.f32.mrf.mxu0
      %681 = vmatprep.mubr.bf16.mxu0 0
      %682 = vmatmul.mubr.bf16.gmra.mxu0 %v494
      %v683 = vpop.f32.mrf.mxu0
      %v684 = vadd.f32 %v442, %v683
      %v685 = vpop.f32.mrf.mxu0
      %v686 = vpop.f32.mrf.mxu0
      %v687 = vadd.f32 %v442, %v686
      %v688 = vpop.f32.mrf.mxu0
      %689 = vmatprep.mubr.bf16.mxu0 0
      %690 = vmatmul.mubr.bf16.gmra.mxu0 %v497
      %v691 = vpop.f32.mrf.mxu0
      %v692 = vadd.f32 %v442, %v691
      %v693 = vpop.f32.mrf.mxu0
      %v694 = vpop.f32.mrf.mxu0
      %v695 = vadd.f32 %v442, %v694
      %v696 = vpop.f32.mrf.mxu0
      %697 = vmatprep.mubr.bf16.mxu0 0
      %698 = vmatmul.mubr.bf16.gmra.mxu0 %v500
      %v699 = vpop.f32.mrf.mxu0
      %v700 = vadd.f32 %v442, %v699
      %v701 = vpop.f32.mrf.mxu0
      %v702 = vpop.f32.mrf.mxu0
      %v703 = vadd.f32 %v442, %v702
      %v704 = vpop.f32.mrf.mxu0
      %705 = vmatprep.mubr.bf16.mxu0 0
      %706 = vmatmul.mubr.bf16.gmra.mxu0 %v503
      %v707 = vpop.f32.mrf.mxu0
      %v708 = vadd.f32 %v442, %v707
      %v709 = vpop.f32.mrf.mxu0
      %v710 = vpop.f32.mrf.mxu0
      %v711 = vadd.f32 %v442, %v710
      %v712 = vpop.f32.mrf.mxu0
      %713 = vmatprep.mubr.bf16.mxu0 0
      %714 = vmatmul.mubr.bf16.gmra.mxu0 %v506
      %v715 = vpop.f32.mrf.mxu0
      %v716 = vadd.f32 %v442, %v715
      %v717 = vpop.f32.mrf.mxu0
      %v718 = vpop.f32.mrf.mxu0
      %v719 = vadd.f32 %v442, %v718
      %v720 = vpop.f32.mrf.mxu0
      %721 = vmatprep.mubr.bf16.mxu0 0
      %722 = vmatmul.mubr.bf16.gmra.mxu0 %v509
      %v723 = vpop.f32.mrf.mxu0
      %v724 = vadd.f32 %v442, %v723
      %v725 = vpop.f32.mrf.mxu0
      %v726 = vpop.f32.mrf.mxu0
      %v727 = vadd.f32 %v442, %v726
      %v728 = vpop.f32.mrf.mxu0
      %729 = vmatprep.mubr.bf16.mxu0 0
      %730 = vmatmul.mubr.bf16.gmra.mxu0 %v512
      %v731 = vpop.f32.mrf.mxu0
      %v732 = vadd.f32 %v442, %v731
      %v733 = vpop.f32.mrf.mxu0
      %v734 = vpop.f32.mrf.mxu0
      %v735 = vadd.f32 %v442, %v734
      %v736 = vpop.f32.mrf.mxu0
      %737 = vmatprep.mubr.bf16.mxu0 0
      %738 = vmatmul.mubr.bf16.gmra.mxu0 %v515
      %v739 = vpop.f32.mrf.mxu0
      %v740 = vadd.f32 %v442, %v739
      %v741 = vpop.f32.mrf.mxu0
      %v742 = vpop.f32.mrf.mxu0
      %v743 = vadd.f32 %v442, %v742
      %v744 = vpop.f32.mrf.mxu0
      %745 = vmatprep.mubr.bf16.mxu0 0
      %746 = vmatmul.mubr.bf16.gmra.mxu0 %v518
      %v747 = vpop.f32.mrf.mxu0
      %v748 = vadd.f32 %v442, %v747
      %v749 = vpop.f32.mrf.mxu0
      %v750 = vpop.f32.mrf.mxu0
      %v751 = vadd.f32 %v442, %v750
      %v752 = vpop.f32.mrf.mxu0
      %753 = vmatprep.mubr.bf16.mxu0 0
      %754 = vmatmul.mubr.bf16.gmra.mxu0 %v521
      %v755 = vpop.f32.mrf.mxu0
      %v756 = vadd.f32 %v442, %v755
      %v757 = vpop.f32.mrf.mxu0
      %v758 = vpop.f32.mrf.mxu0
      %v759 = vadd.f32 %v442, %v758
      %v760 = vpop.f32.mrf.mxu0
      %761 = vmatprep.mubr.bf16.mxu0 0
      %762 = vmatmul.mubr.bf16.gmra.mxu0 %v524
      %v763 = vpop.f32.mrf.mxu0
      %v764 = vadd.f32 %v442, %v763
      %v765 = vpop.f32.mrf.mxu0
      %v766 = vpop.f32.mrf.mxu0
      %v767 = vadd.f32 %v442, %v766
      %v768 = vpop.f32.mrf.mxu0
      %769 = vmatprep.mubr.bf16.mxu0 0
      %770 = vmatmul.mubr.bf16.gmra.mxu0 %v527
      %v771 = vpop.f32.mrf.mxu0
      %v772 = vadd.f32 %v442, %v771
      %v773 = vpop.f32.mrf.mxu0
      %v774 = vpop.f32.mrf.mxu0
      %v775 = vadd.f32 %v442, %v774
      %v776 = vpop.f32.mrf.mxu0
      %777 = vmatprep.mubr.bf16.mxu0 0
      %778 = vmatmul.mubr.bf16.gmra.mxu0 %v530
      %v779 = vpop.f32.mrf.mxu0
      %v780 = vadd.f32 %v442, %v779
      %v781 = vpop.f32.mrf.mxu0
      %v782 = vpop.f32.mrf.mxu0
      %v783 = vadd.f32 %v442, %v782
      %v784 = vpop.f32.mrf.mxu0
      %785 = vmatprep.mubr.bf16.mxu0 0
      %786 = vmatmul.mubr.bf16.gmra.mxu0 %v533
      %v787 = vpop.f32.mrf.mxu0
      %v788 = vadd.f32 %v442, %v787
      %v789 = vpop.f32.mrf.mxu0
      %v790 = vpop.f32.mrf.mxu0
      %v791 = vadd.f32 %v442, %v790
      %v792 = vpop.f32.mrf.mxu0
      %793 = vmatprep.mubr.bf16.mxu0 0
      %794 = vmatmul.mubr.bf16.gmra.mxu0 %v536
      %v795 = vpop.f32.mrf.mxu0
      %v796 = vadd.f32 %v442, %v795
      %v797 = vpop.f32.mrf.mxu0
      %v798 = vpop.f32.mrf.mxu0
      %v799 = vadd.f32 %v442, %v798
      %v800 = vpop.f32.mrf.mxu0
      %801 = vmatprep.mubr.bf16.mxu0 0
      %802 = vmatmul.mubr.bf16.gmra.mxu0 %v539
      %v803 = vpop.f32.mrf.mxu0
      %v804 = vadd.f32 %v442, %v803
      %v805 = vpop.f32.mrf.mxu0
      %v806 = vpop.f32.mrf.mxu0
      %v807 = vadd.f32 %v442, %v806
      %v808 = vpop.f32.mrf.mxu0
      %809 = vmatprep.mubr.bf16.mxu0 0
      %810 = vmatmul.mubr.bf16.gmra.mxu0 %v542
      %v811 = vpop.f32.mrf.mxu0
      %v812 = vadd.f32 %v442, %v811
      %v813 = vpop.f32.mrf.mxu0
      %v814 = vpop.f32.mrf.mxu0
      %v815 = vadd.f32 %v442, %v814
      %v816 = vpop.f32.mrf.mxu0
      %817 = vmatprep.mubr.bf16.mxu0 0
      %818 = vmatmul.mubr.bf16.gmra.mxu0 %v545
      %v819 = vpop.f32.mrf.mxu0
      %v820 = vadd.f32 %v442, %v819
      %v821 = vpop.f32.mrf.mxu0
      %v822 = vpop.f32.mrf.mxu0
      %v823 = vadd.f32 %v442, %v822
      %v824 = vpop.f32.mrf.mxu0
      %825 = vmatprep.mubr.bf16.mxu0 0
      %826 = vmatmul.mubr.bf16.gmra.mxu0 %v548
      %v827 = vpop.f32.mrf.mxu0
      %v828 = vadd.f32 %v442, %v827
      %v829 = vpop.f32.mrf.mxu0
      %v830 = vpop.f32.mrf.mxu0
      %v831 = vadd.f32 %v442, %v830
      %v832 = vpop.f32.mrf.mxu0
      %833 = vmatprep.mubr.bf16.mxu0 0
      %834 = vmatmul.mubr.bf16.gmra.mxu0 %v551
      %v835 = vpop.f32.mrf.mxu0
      %v836 = vadd.f32 %v442, %v835
      %v837 = vpop.f32.mrf.mxu0
      %v838 = vpop.f32.mrf.mxu0
      %v839 = vadd.f32 %v442, %v838
      %v840 = vpop.f32.mrf.mxu0
      %841 = vdwg.mxu0
      %v842 = vmax.f32 %v588, 0.0
      %v843 = vmax.f32 %v591, 0.0
      %v844 = vmax.f32 %v596, 0.0
      %v845 = vmax.f32 %v599, 0.0
      %v846 = vmax.f32 %v604, 0.0
      %v847 = vmax.f32 %v607, 0.0
      %v848 = vmax.f32 %v612, 0.0
      %v849 = vmax.f32 %v615, 0.0
      %v850 = vmax.f32 %v620, 0.0
      %v851 = vmax.f32 %v623, 0.0
      %v852 = vmax.f32 %v628, 0.0
      %v853 = vmax.f32 %v631, 0.0
      %v854 = vmax.f32 %v636, 0.0
      %v855 = vmax.f32 %v639, 0.0
      %v856 = vmax.f32 %v644, 0.0
      %v857 = vmax.f32 %v647, 0.0
      %v858 = vmax.f32 %v652, 0.0
      %v859 = vmax.f32 %v655, 0.0
      %v860 = vmax.f32 %v660, 0.0
      %v861 = vmax.f32 %v663, 0.0
      %v862 = vmax.f32 %v668, 0.0
      %v863 = vmax.f32 %v671, 0.0
      %v864 = vmax.f32 %v676, 0.0
      %v865 = vmax.f32 %v679, 0.0
      %v866 = vmax.f32 %v684, 0.0
      %v867 = vmax.f32 %v687, 0.0
      %v868 = vmax.f32 %v692, 0.0
      %v869 = vmax.f32 %v695, 0.0
      %v870 = vmax.f32 %v700, 0.0
      %v871 = vmax.f32 %v703, 0.0
      %v872 = vmax.f32 %v708, 0.0
      %v873 = vmax.f32 %v711, 0.0
      %v874 = vmax.f32 %v716, 0.0
      %v875 = vmax.f32 %v719, 0.0
      %v876 = vmax.f32 %v724, 0.0
      %v877 = vmax.f32 %v727, 0.0
      %v878 = vmax.f32 %v732, 0.0
      %v879 = vmax.f32 %v735, 0.0
      %v880 = vmax.f32 %v740, 0.0
      %v881 = vmax.f32 %v743, 0.0
      %v882 = vmax.f32 %v748, 0.0
      %v883 = vmax.f32 %v751, 0.0
      %v884 = vmax.f32 %v756, 0.0
      %v885 = vmax.f32 %v759, 0.0
      %v886 = vmax.f32 %v764, 0.0
      %v887 = vmax.f32 %v767, 0.0
      %v888 = vmax.f32 %v772, 0.0
      %v889 = vmax.f32 %v775, 0.0
      %v890 = vmax.f32 %v780, 0.0
      %v891 = vmax.f32 %v783, 0.0
      %v892 = vmax.f32 %v788, 0.0
      %v893 = vmax.f32 %v791, 0.0
      %v894 = vmax.f32 %v796, 0.0
      %v895 = vmax.f32 %v799, 0.0
      %v896 = vmax.f32 %v804, 0.0
      %v897 = vmax.f32 %v807, 0.0
      %v898 = vmax.f32 %v812, 0.0
      %v899 = vmax.f32 %v815, 0.0
      %v900 = vmax.f32 %v820, 0.0
      %v901 = vmax.f32 %v823, 0.0
      %v902 = vmax.f32 %v828, 0.0
      %v903 = vmax.f32 %v831, 0.0
      %v904 = vmax.f32 %v836, 0.0
      %v905 = vmax.f32 %v839, 0.0
      %v906 = vpack.c.bf16 %v843, %v842
      %v907 = vpack.c.bf16 %v845, %v844
      %v908 = vpack.c.bf16 %v847, %v846
      %v909 = vpack.c.bf16 %v849, %v848
      %v910 = vpack.c.bf16 %v851, %v850
      %v911 = vpack.c.bf16 %v853, %v852
      %v912 = vpack.c.bf16 %v855, %v854
      %v913 = vpack.c.bf16 %v857, %v856
      %v914 = vpack.c.bf16 %v859, %v858
      %v915 = vpack.c.bf16 %v861, %v860
      %v916 = vpack.c.bf16 %v863, %v862
      %v917 = vpack.c.bf16 %v865, %v864
      %v918 = vpack.c.bf16 %v867, %v866
      %v919 = vpack.c.bf16 %v869, %v868
      %v920 = vpack.c.bf16 %v871, %v870
      %v921 = vpack.c.bf16 %v873, %v872
      %v922 = vpack.c.bf16 %v875, %v874
      %v923 = vpack.c.bf16 %v877, %v876
      %v924 = vpack.c.bf16 %v879, %v878
      %v925 = vpack.c.bf16 %v881, %v880
      %v926 = vpack.c.bf16 %v883, %v882
      %v927 = vpack.c.bf16 %v885, %v884
      %v928 = vpack.c.bf16 %v887, %v886
      %v929 = vpack.c.bf16 %v889, %v888
      %v930 = vpack.c.bf16 %v891, %v890
      %v931 = vpack.c.bf16 %v893, %v892
      %v932 = vpack.c.bf16 %v895, %v894
      %v933 = vpack.c.bf16 %v897, %v896
      %v934 = vpack.c.bf16 %v899, %v898
      %v935 = vpack.c.bf16 %v901, %v900
      %v936 = vpack.c.bf16 %v903, %v902
      %v937 = vpack.c.bf16 %v905, %v904
      %v938 = vld [vmem:[%s3] sm:$0xf]
      %v939 = vld [vmem:[%s3 + $0x4] sm:$0xf]
      %v940 = vld [vmem:[%s3 + $0x8] sm:$0xf]
      %v941 = vld [vmem:[%s3 + $0xc] sm:$0xf]
      %v942 = vld [vmem:[%s3 + $0x10] sm:$0xf]
      %v943 = vld [vmem:[%s3 + $0x14] sm:$0xf]
      %v944 = vld [vmem:[%s3 + $0x18] sm:$0xf]
      %v945 = vld [vmem:[%s3 + $0x1c] sm:$0xf]
      %v946 = vld [vmem:[%s3 + $0x20] sm:$0xf]
      %v947 = vld [vmem:[%s3 + $0x24] sm:$0xf]
      %v948 = vld [vmem:[%s3 + $0x28] sm:$0xf]
      %v949 = vld [vmem:[%s3 + $0x2c] sm:$0xf]
      %v950 = vld [vmem:[%s3 + $0x30] sm:$0xf]
      %v951 = vld [vmem:[%s3 + $0x34] sm:$0xf]
      %v952 = vld [vmem:[%s3 + $0x38] sm:$0xf]
      %v953 = vld [vmem:[%s3 + $0x3c] sm:$0xf]
      %v954 = vld [vmem:[%s4] sm:$0x1]
      %v956 = vlaneseq
      %v957 = vshrl.u32 %v956, 7
      %v958 = vsub.s32 0, %v957
      %v959 = vrot.slane %v954, %v958
      %v977 = vunpack.c.l.b16 %v938
      %v978 = vunpack.c.l.b16 %v939
      %v979 = vunpack.c.l.b16 %v940
      %v980 = vunpack.c.l.b16 %v941
      %v981 = vunpack.c.l.b16 %v942
      %v982 = vunpack.c.l.b16 %v943
      %v983 = vunpack.c.l.b16 %v944
      %v984 = vunpack.c.l.b16 %v945
      %v985 = vunpack.c.l.b16 %v946
      %v986 = vunpack.c.l.b16 %v947
      %v987 = vunpack.c.l.b16 %v948
      %v988 = vunpack.c.l.b16 %v949
      %v989 = vunpack.c.l.b16 %v950
      %v990 = vunpack.c.l.b16 %v951
      %v991 = vunpack.c.l.b16 %v952
      %v992 = vunpack.c.l.b16 %v953
      %v993 = vpack.c.b16 %v978, %v977
      %v994 = vpack.c.b16 %v980, %v979
      %v995 = vpack.c.b16 %v982, %v981
      %v996 = vpack.c.b16 %v984, %v983
      %v997 = vpack.c.b16 %v986, %v985
      %v998 = vpack.c.b16 %v988, %v987
      %v999 = vpack.c.b16 %v990, %v989
      %v1000 = vpack.c.b16 %v992, %v991
      %1009 = vmatprep.subr.bf16.mxu0 0
      %1010 = vmatpush1.bf16.msra.mxu0 %v1000
      %1011 = vmatprep.subr.bf16.mxu0 0
      %1012 = vmatpush1.bf16.msra.mxu0 %v999
      %1013 = vmatprep.subr.bf16.mxu0 0
      %1014 = vmatpush1.bf16.msra.mxu0 %v998
      %1015 = vmatprep.subr.bf16.mxu0 0
      %1016 = vmatpush1.bf16.msra.mxu0 %v997
      %1017 = vmatprep.subr.bf16.mxu0 0
      %1018 = vmatpush1.bf16.msra.mxu0 %v996
      %1019 = vmatprep.subr.bf16.mxu0 0
      %1020 = vmatpush1.bf16.msra.mxu0 %v995
      %1021 = vmatprep.subr.bf16.mxu0 0
      %1022 = vmatpush1.bf16.msra.mxu0 %v994
      %1023 = vmatprep.subr.bf16.mxu0 0
      %1024 = vmatpush1.bf16.msra.mxu0 %v993
      %1025 = vmatprep.subr.bf16.mxu0 0
      %1026 = vmatpush2.bf16.msra.mxu0 0
      %1027 = vmatprep.subr.bf16.mxu0 0
      %1028 = vmatpush2.bf16.msra.mxu0 0
      %1029 = vmatprep.subr.bf16.mxu0 0
      %1030 = vmatpush2.bf16.msra.mxu0 0
      %1031 = vmatprep.subr.bf16.mxu0 0
      %1032 = vmatpush2.bf16.msra.mxu0 0
      %1033 = vmatprep.subr.bf16.mxu0 0
      %1034 = vmatpush2.bf16.msra.mxu0 0
      %1035 = vmatprep.subr.bf16.mxu0 0
      %1036 = vmatpush2.bf16.msra.mxu0 0
      %1037 = vmatprep.subr.bf16.mxu0 0
      %1038 = vmatpush2.bf16.msra.mxu0 0
      %1039 = vmatprep.subr.bf16.mxu0 0
      %1040 = vmatpush2.bf16.msra.mxu0 0
      %1041 = vmatprep.mubr.bf16.mxu0 0
      %1042 = vmatmul.mubr.bf16.gmra.mxu0 %v906
      %v1043 = vpop.f32.mrf.mxu0
      %v1044 = vadd.f32 %v959, %v1043
      %v1045 = vpop.f32.mrf.mxu0
      %v1046 = vpop.f32.mrf.mxu0
      %v1047 = vadd.f32 %v959, %v1046
      %v1048 = vpop.f32.mrf.mxu0
      %1049 = vmatprep.mubr.bf16.mxu0 0
      %1050 = vmatmul.mubr.bf16.gmra.mxu0 %v907
      %v1051 = vpop.f32.mrf.mxu0
      %v1052 = vadd.f32 %v959, %v1051
      %v1053 = vpop.f32.mrf.mxu0
      %v1054 = vpop.f32.mrf.mxu0
      %v1055 = vadd.f32 %v959, %v1054
      %v1056 = vpop.f32.mrf.mxu0
      %1057 = vmatprep.mubr.bf16.mxu0 0
      %1058 = vmatmul.mubr.bf16.gmra.mxu0 %v908
      %v1059 = vpop.f32.mrf.mxu0
      %v1060 = vadd.f32 %v959, %v1059
      %v1061 = vpop.f32.mrf.mxu0
      %v1062 = vpop.f32.mrf.mxu0
      %v1063 = vadd.f32 %v959, %v1062
      %v1064 = vpop.f32.mrf.mxu0
      %1065 = vmatprep.mubr.bf16.mxu0 0
      %1066 = vmatmul.mubr.bf16.gmra.mxu0 %v909
      %v1067 = vpop.f32.mrf.mxu0
      %v1068 = vadd.f32 %v959, %v1067
      %v1069 = vpop.f32.mrf.mxu0
      %v1070 = vpop.f32.mrf.mxu0
      %v1071 = vadd.f32 %v959, %v1070
      %v1072 = vpop.f32.mrf.mxu0
      %1073 = vmatprep.mubr.bf16.mxu0 0
      %1074 = vmatmul.mubr.bf16.gmra.mxu0 %v910
      %v1075 = vpop.f32.mrf.mxu0
      %v1076 = vadd.f32 %v959, %v1075
      %v1077 = vpop.f32.mrf.mxu0
      %v1078 = vpop.f32.mrf.mxu0
      %v1079 = vadd.f32 %v959, %v1078
      %v1080 = vpop.f32.mrf.mxu0
      %1081 = vmatprep.mubr.bf16.mxu0 0
      %1082 = vmatmul.mubr.bf16.gmra.mxu0 %v911
      %v1083 = vpop.f32.mrf.mxu0
      %v1084 = vadd.f32 %v959, %v1083
      %v1085 = vpop.f32.mrf.mxu0
      %v1086 = vpop.f32.mrf.mxu0
      %v1087 = vadd.f32 %v959, %v1086
      %v1088 = vpop.f32.mrf.mxu0
      %1089 = vmatprep.mubr.bf16.mxu0 0
      %1090 = vmatmul.mubr.bf16.gmra.mxu0 %v912
      %v1091 = vpop.f32.mrf.mxu0
      %v1092 = vadd.f32 %v959, %v1091
      %v1093 = vpop.f32.mrf.mxu0
      %v1094 = vpop.f32.mrf.mxu0
      %v1095 = vadd.f32 %v959, %v1094
      %v1096 = vpop.f32.mrf.mxu0
      %1097 = vmatprep.mubr.bf16.mxu0 0
      %1098 = vmatmul.mubr.bf16.gmra.mxu0 %v913
      %v1099 = vpop.f32.mrf.mxu0
      %v1100 = vadd.f32 %v959, %v1099
      %v1101 = vpop.f32.mrf.mxu0
      %v1102 = vpop.f32.mrf.mxu0
      %v1103 = vadd.f32 %v959, %v1102
      %v1104 = vpop.f32.mrf.mxu0
      %1105 = vmatprep.mubr.bf16.mxu0 0
      %1106 = vmatmul.mubr.bf16.gmra.mxu0 %v914
      %v1107 = vpop.f32.mrf.mxu0
      %v1108 = vadd.f32 %v959, %v1107
      %v1109 = vpop.f32.mrf.mxu0
      %v1110 = vpop.f32.mrf.mxu0
      %v1111 = vadd.f32 %v959, %v1110
      %v1112 = vpop.f32.mrf.mxu0
      %1113 = vmatprep.mubr.bf16.mxu0 0
      %1114 = vmatmul.mubr.bf16.gmra.mxu0 %v915
      %v1115 = vpop.f32.mrf.mxu0
      %v1116 = vadd.f32 %v959, %v1115
      %v1117 = vpop.f32.mrf.mxu0
      %v1118 = vpop.f32.mrf.mxu0
      %v1119 = vadd.f32 %v959, %v1118
      %v1120 = vpop.f32.mrf.mxu0
      %1121 = vmatprep.mubr.bf16.mxu0 0
      %1122 = vmatmul.mubr.bf16.gmra.mxu0 %v916
      %v1123 = vpop.f32.mrf.mxu0
      %v1124 = vadd.f32 %v959, %v1123
      %v1125 = vpop.f32.mrf.mxu0
      %v1126 = vpop.f32.mrf.mxu0
      %v1127 = vadd.f32 %v959, %v1126
      %v1128 = vpop.f32.mrf.mxu0
      %1129 = vmatprep.mubr.bf16.mxu0 0
      %1130 = vmatmul.mubr.bf16.gmra.mxu0 %v917
      %v1131 = vpop.f32.mrf.mxu0
      %v1132 = vadd.f32 %v959, %v1131
      %v1133 = vpop.f32.mrf.mxu0
      %v1134 = vpop.f32.mrf.mxu0
      %v1135 = vadd.f32 %v959, %v1134
      %v1136 = vpop.f32.mrf.mxu0
      %1137 = vmatprep.mubr.bf16.mxu0 0
      %1138 = vmatmul.mubr.bf16.gmra.mxu0 %v918
      %v1139 = vpop.f32.mrf.mxu0
      %v1140 = vadd.f32 %v959, %v1139
      %v1141 = vpop.f32.mrf.mxu0
      %v1142 = vpop.f32.mrf.mxu0
      %v1143 = vadd.f32 %v959, %v1142
      %v1144 = vpop.f32.mrf.mxu0
      %1145 = vmatprep.mubr.bf16.mxu0 0
      %1146 = vmatmul.mubr.bf16.gmra.mxu0 %v919
      %v1147 = vpop.f32.mrf.mxu0
      %v1148 = vadd.f32 %v959, %v1147
      %v1149 = vpop.f32.mrf.mxu0
      %v1150 = vpop.f32.mrf.mxu0
      %v1151 = vadd.f32 %v959, %v1150
      %v1152 = vpop.f32.mrf.mxu0
      %1153 = vmatprep.mubr.bf16.mxu0 0
      %1154 = vmatmul.mubr.bf16.gmra.mxu0 %v920
      %v1155 = vpop.f32.mrf.mxu0
      %v1156 = vadd.f32 %v959, %v1155
      %v1157 = vpop.f32.mrf.mxu0
      %v1158 = vpop.f32.mrf.mxu0
      %v1159 = vadd.f32 %v959, %v1158
      %v1160 = vpop.f32.mrf.mxu0
      %1161 = vmatprep.mubr.bf16.mxu0 0
      %1162 = vmatmul.mubr.bf16.gmra.mxu0 %v921
      %v1163 = vpop.f32.mrf.mxu0
      %v1164 = vadd.f32 %v959, %v1163
      %v1165 = vpop.f32.mrf.mxu0
      %v1166 = vpop.f32.mrf.mxu0
      %v1167 = vadd.f32 %v959, %v1166
      %v1168 = vpop.f32.mrf.mxu0
      %1169 = vmatprep.mubr.bf16.mxu0 0
      %1170 = vmatmul.mubr.bf16.gmra.mxu0 %v922
      %v1171 = vpop.f32.mrf.mxu0
      %v1172 = vadd.f32 %v959, %v1171
      %v1173 = vpop.f32.mrf.mxu0
      %v1174 = vpop.f32.mrf.mxu0
      %v1175 = vadd.f32 %v959, %v1174
      %v1176 = vpop.f32.mrf.mxu0
      %1177 = vmatprep.mubr.bf16.mxu0 0
      %1178 = vmatmul.mubr.bf16.gmra.mxu0 %v923
      %v1179 = vpop.f32.mrf.mxu0
      %v1180 = vadd.f32 %v959, %v1179
      %v1181 = vpop.f32.mrf.mxu0
      %v1182 = vpop.f32.mrf.mxu0
      %v1183 = vadd.f32 %v959, %v1182
      %v1184 = vpop.f32.mrf.mxu0
      %1185 = vmatprep.mubr.bf16.mxu0 0
      %1186 = vmatmul.mubr.bf16.gmra.mxu0 %v924
      %v1187 = vpop.f32.mrf.mxu0
      %v1188 = vadd.f32 %v959, %v1187
      %v1189 = vpop.f32.mrf.mxu0
      %v1190 = vpop.f32.mrf.mxu0
      %v1191 = vadd.f32 %v959, %v1190
      %v1192 = vpop.f32.mrf.mxu0
      %1193 = vmatprep.mubr.bf16.mxu0 0
      %1194 = vmatmul.mubr.bf16.gmra.mxu0 %v925
      %v1195 = vpop.f32.mrf.mxu0
      %v1196 = vadd.f32 %v959, %v1195
      %v1197 = vpop.f32.mrf.mxu0
      %v1198 = vpop.f32.mrf.mxu0
      %v1199 = vadd.f32 %v959, %v1198
      %v1200 = vpop.f32.mrf.mxu0
      %1201 = vmatprep.mubr.bf16.mxu0 0
      %1202 = vmatmul.mubr.bf16.gmra.mxu0 %v926
      %v1203 = vpop.f32.mrf.mxu0
      %v1204 = vadd.f32 %v959, %v1203
      %v1205 = vpop.f32.mrf.mxu0
      %v1206 = vpop.f32.mrf.mxu0
      %v1207 = vadd.f32 %v959, %v1206
      %v1208 = vpop.f32.mrf.mxu0
      %1209 = vmatprep.mubr.bf16.mxu0 0
      %1210 = vmatmul.mubr.bf16.gmra.mxu0 %v927
      %v1211 = vpop.f32.mrf.mxu0
      %v1212 = vadd.f32 %v959, %v1211
      %v1213 = vpop.f32.mrf.mxu0
      %v1214 = vpop.f32.mrf.mxu0
      %v1215 = vadd.f32 %v959, %v1214
      %v1216 = vpop.f32.mrf.mxu0
      %1217 = vmatprep.mubr.bf16.mxu0 0
      %1218 = vmatmul.mubr.bf16.gmra.mxu0 %v928
      %v1219 = vpop.f32.mrf.mxu0
      %v1220 = vadd.f32 %v959, %v1219
      %v1221 = vpop.f32.mrf.mxu0
      %v1222 = vpop.f32.mrf.mxu0
      %v1223 = vadd.f32 %v959, %v1222
      %v1224 = vpop.f32.mrf.mxu0
      %1225 = vmatprep.mubr.bf16.mxu0 0
      %1226 = vmatmul.mubr.bf16.gmra.mxu0 %v929
      %v1227 = vpop.f32.mrf.mxu0
      %v1228 = vadd.f32 %v959, %v1227
      %v1229 = vpop.f32.mrf.mxu0
      %v1230 = vpop.f32.mrf.mxu0
      %v1231 = vadd.f32 %v959, %v1230
      %v1232 = vpop.f32.mrf.mxu0
      %1233 = vmatprep.mubr.bf16.mxu0 0
      %1234 = vmatmul.mubr.bf16.gmra.mxu0 %v930
      %v1235 = vpop.f32.mrf.mxu0
      %v1236 = vadd.f32 %v959, %v1235
      %v1237 = vpop.f32.mrf.mxu0
      %v1238 = vpop.f32.mrf.mxu0
      %v1239 = vadd.f32 %v959, %v1238
      %v1240 = vpop.f32.mrf.mxu0
      %1241 = vmatprep.mubr.bf16.mxu0 0
      %1242 = vmatmul.mubr.bf16.gmra.mxu0 %v931
      %v1243 = vpop.f32.mrf.mxu0
      %v1244 = vadd.f32 %v959, %v1243
      %v1245 = vpop.f32.mrf.mxu0
      %v1246 = vpop.f32.mrf.mxu0
      %v1247 = vadd.f32 %v959, %v1246
      %v1248 = vpop.f32.mrf.mxu0
      %1249 = vmatprep.mubr.bf16.mxu0 0
      %1250 = vmatmul.mubr.bf16.gmra.mxu0 %v932
      %v1251 = vpop.f32.mrf.mxu0
      %v1252 = vadd.f32 %v959, %v1251
      %v1253 = vpop.f32.mrf.mxu0
      %v1254 = vpop.f32.mrf.mxu0
      %v1255 = vadd.f32 %v959, %v1254
      %v1256 = vpop.f32.mrf.mxu0
      %1257 = vmatprep.mubr.bf16.mxu0 0
      %1258 = vmatmul.mubr.bf16.gmra.mxu0 %v933
      %v1259 = vpop.f32.mrf.mxu0
      %v1260 = vadd.f32 %v959, %v1259
      %v1261 = vpop.f32.mrf.mxu0
      %v1262 = vpop.f32.mrf.mxu0
      %v1263 = vadd.f32 %v959, %v1262
      %v1264 = vpop.f32.mrf.mxu0
      %1265 = vmatprep.mubr.bf16.mxu0 0
      %1266 = vmatmul.mubr.bf16.gmra.mxu0 %v934
      %v1267 = vpop.f32.mrf.mxu0
      %v1268 = vadd.f32 %v959, %v1267
      %v1269 = vpop.f32.mrf.mxu0
      %v1270 = vpop.f32.mrf.mxu0
      %v1271 = vadd.f32 %v959, %v1270
      %v1272 = vpop.f32.mrf.mxu0
      %1273 = vmatprep.mubr.bf16.mxu0 0
      %1274 = vmatmul.mubr.bf16.gmra.mxu0 %v935
      %v1275 = vpop.f32.mrf.mxu0
      %v1276 = vadd.f32 %v959, %v1275
      %v1277 = vpop.f32.mrf.mxu0
      %v1278 = vpop.f32.mrf.mxu0
      %v1279 = vadd.f32 %v959, %v1278
      %v1280 = vpop.f32.mrf.mxu0
      %1281 = vmatprep.mubr.bf16.mxu0 0
      %1282 = vmatmul.mubr.bf16.gmra.mxu0 %v936
      %v1283 = vpop.f32.mrf.mxu0
      %v1284 = vadd.f32 %v959, %v1283
      %v1285 = vpop.f32.mrf.mxu0
      %v1286 = vpop.f32.mrf.mxu0
      %v1287 = vadd.f32 %v959, %v1286
      %v1288 = vpop.f32.mrf.mxu0
      %1289 = vmatprep.mubr.bf16.mxu0 0
      %1290 = vmatmul.mubr.bf16.gmra.mxu0 %v937
      %v1291 = vpop.f32.mrf.mxu0
      %v1292 = vadd.f32 %v959, %v1291
      %v1293 = vpop.f32.mrf.mxu0
      %v1294 = vpop.f32.mrf.mxu0
      %v1295 = vadd.f32 %v959, %v1294
      %v1296 = vpop.f32.mrf.mxu0
      %1297 = vdwg.mxu0
      %v1298 = vmax.f32 %v1044, 0.0
      %v1299 = vmax.f32 %v1047, 0.0
      %v1300 = vmax.f32 %v1052, 0.0
      %v1301 = vmax.f32 %v1055, 0.0
      %v1302 = vmax.f32 %v1060, 0.0
      %v1303 = vmax.f32 %v1063, 0.0
      %v1304 = vmax.f32 %v1068, 0.0
      %v1305 = vmax.f32 %v1071, 0.0
      %v1306 = vmax.f32 %v1076, 0.0
      %v1307 = vmax.f32 %v1079, 0.0
      %v1308 = vmax.f32 %v1084, 0.0
      %v1309 = vmax.f32 %v1087, 0.0
      %v1310 = vmax.f32 %v1092, 0.0
      %v1311 = vmax.f32 %v1095, 0.0
      %v1312 = vmax.f32 %v1100, 0.0
      %v1313 = vmax.f32 %v1103, 0.0
      %v1314 = vmax.f32 %v1108, 0.0
      %v1315 = vmax.f32 %v1111, 0.0
      %v1316 = vmax.f32 %v1116, 0.0
      %v1317 = vmax.f32 %v1119, 0.0
      %v1318 = vmax.f32 %v1124, 0.0
      %v1319 = vmax.f32 %v1127, 0.0
      %v1320 = vmax.f32 %v1132, 0.0
      %v1321 = vmax.f32 %v1135, 0.0
      %v1322 = vmax.f32 %v1140, 0.0
      %v1323 = vmax.f32 %v1143, 0.0
      %v1324 = vmax.f32 %v1148, 0.0
      %v1325 = vmax.f32 %v1151, 0.0
      %v1326 = vmax.f32 %v1156, 0.0
      %v1327 = vmax.f32 %v1159, 0.0
      %v1328 = vmax.f32 %v1164, 0.0
      %v1329 = vmax.f32 %v1167, 0.0
      %v1330 = vmax.f32 %v1172, 0.0
      %v1331 = vmax.f32 %v1175, 0.0
      %v1332 = vmax.f32 %v1180, 0.0
      %v1333 = vmax.f32 %v1183, 0.0
      %v1334 = vmax.f32 %v1188, 0.0
      %v1335 = vmax.f32 %v1191, 0.0
      %v1336 = vmax.f32 %v1196, 0.0
      %v1337 = vmax.f32 %v1199, 0.0
      %v1338 = vmax.f32 %v1204, 0.0
      %v1339 = vmax.f32 %v1207, 0.0
      %v1340 = vmax.f32 %v1212, 0.0
      %v1341 = vmax.f32 %v1215, 0.0
      %v1342 = vmax.f32 %v1220, 0.0
      %v1343 = vmax.f32 %v1223, 0.0
      %v1344 = vmax.f32 %v1228, 0.0
      %v1345 = vmax.f32 %v1231, 0.0
      %v1346 = vmax.f32 %v1236, 0.0
      %v1347 = vmax.f32 %v1239, 0.0
      %v1348 = vmax.f32 %v1244, 0.0
      %v1349 = vmax.f32 %v1247, 0.0
      %v1350 = vmax.f32 %v1252, 0.0
      %v1351 = vmax.f32 %v1255, 0.0
      %v1352 = vmax.f32 %v1260, 0.0
      %v1353 = vmax.f32 %v1263, 0.0
      %v1354 = vmax.f32 %v1268, 0.0
      %v1355 = vmax.f32 %v1271, 0.0
      %v1356 = vmax.f32 %v1276, 0.0
      %v1357 = vmax.f32 %v1279, 0.0
      %v1358 = vmax.f32 %v1284, 0.0
      %v1359 = vmax.f32 %v1287, 0.0
      %v1360 = vmax.f32 %v1292, 0.0
      %v1361 = vmax.f32 %v1295, 0.0
      %v1362 = vpack.c.bf16 %v1299, %v1298
      %v1363 = vpack.c.bf16 %v1301, %v1300
      %v1364 = vpack.c.bf16 %v1303, %v1302
      %v1365 = vpack.c.bf16 %v1305, %v1304
      %v1366 = vpack.c.bf16 %v1307, %v1306
      %v1367 = vpack.c.bf16 %v1309, %v1308
      %v1368 = vpack.c.bf16 %v1311, %v1310
      %v1369 = vpack.c.bf16 %v1313, %v1312
      %v1370 = vpack.c.bf16 %v1315, %v1314
      %v1371 = vpack.c.bf16 %v1317, %v1316
      %v1372 = vpack.c.bf16 %v1319, %v1318
      %v1373 = vpack.c.bf16 %v1321, %v1320
      %v1374 = vpack.c.bf16 %v1323, %v1322
      %v1375 = vpack.c.bf16 %v1325, %v1324
      %v1376 = vpack.c.bf16 %v1327, %v1326
      %v1377 = vpack.c.bf16 %v1329, %v1328
      %v1378 = vpack.c.bf16 %v1331, %v1330
      %v1379 = vpack.c.bf16 %v1333, %v1332
      %v1380 = vpack.c.bf16 %v1335, %v1334
      %v1381 = vpack.c.bf16 %v1337, %v1336
      %v1382 = vpack.c.bf16 %v1339, %v1338
      %v1383 = vpack.c.bf16 %v1341, %v1340
      %v1384 = vpack.c.bf16 %v1343, %v1342
      %v1385 = vpack.c.bf16 %v1345, %v1344
      %v1386 = vpack.c.bf16 %v1347, %v1346
      %v1387 = vpack.c.bf16 %v1349, %v1348
      %v1388 = vpack.c.bf16 %v1351, %v1350
      %v1389 = vpack.c.bf16 %v1353, %v1352
      %v1390 = vpack.c.bf16 %v1355, %v1354
      %v1391 = vpack.c.bf16 %v1357, %v1356
      %v1392 = vpack.c.bf16 %v1359, %v1358
      %v1393 = vpack.c.bf16 %v1361, %v1360
      %v1394 = vld [vmem:[%s5] sm:$0xf]
      %v1395 = vld [vmem:[%s5 + $0x4] sm:$0xf]
      %v1396 = vld [vmem:[%s5 + $0x8] sm:$0xf]
      %v1397 = vld [vmem:[%s5 + $0xc] sm:$0xf]
      %v1398 = vld [vmem:[%s5 + $0x10] sm:$0xf]
      %v1399 = vld [vmem:[%s5 + $0x14] sm:$0xf]
      %v1400 = vld [vmem:[%s5 + $0x18] sm:$0xf]
      %v1401 = vld [vmem:[%s5 + $0x1c] sm:$0xf]
      %v1402 = vld [vmem:[%s5 + $0x20] sm:$0xf]
      %v1403 = vld [vmem:[%s5 + $0x24] sm:$0xf]
      %v1404 = vld [vmem:[%s5 + $0x28] sm:$0xf]
      %v1405 = vld [vmem:[%s5 + $0x2c] sm:$0xf]
      %v1406 = vld [vmem:[%s5 + $0x30] sm:$0xf]
      %v1407 = vld [vmem:[%s5 + $0x34] sm:$0xf]
      %v1408 = vld [vmem:[%s5 + $0x38] sm:$0xf]
      %v1409 = vld [vmem:[%s5 + $0x3c] sm:$0xf]
      %v1410 = vld [vmem:[%s6] sm:$0x1]
      %v1412 = vlaneseq
      %v1413 = vshrl.u32 %v1412, 7
      %v1414 = vsub.s32 0, %v1413
      %v1415 = vrot.slane %v1410, %v1414
      %v1433 = vunpack.c.l.b16 %v1394
      %v1434 = vunpack.c.l.b16 %v1395
      %v1435 = vunpack.c.l.b16 %v1396
      %v1436 = vunpack.c.l.b16 %v1397
      %v1437 = vunpack.c.l.b16 %v1398
      %v1438 = vunpack.c.l.b16 %v1399
      %v1439 = vunpack.c.l.b16 %v1400
      %v1440 = vunpack.c.l.b16 %v1401
      %v1441 = vunpack.c.l.b16 %v1402
      %v1442 = vunpack.c.l.b16 %v1403
      %v1443 = vunpack.c.l.b16 %v1404
      %v1444 = vunpack.c.l.b16 %v1405
      %v1445 = vunpack.c.l.b16 %v1406
      %v1446 = vunpack.c.l.b16 %v1407
      %v1447 = vunpack.c.l.b16 %v1408
      %v1448 = vunpack.c.l.b16 %v1409
      %v1449 = vpack.c.b16 %v1434, %v1433
      %v1450 = vpack.c.b16 %v1436, %v1435
      %v1451 = vpack.c.b16 %v1438, %v1437
      %v1452 = vpack.c.b16 %v1440, %v1439
      %v1453 = vpack.c.b16 %v1442, %v1441
      %v1454 = vpack.c.b16 %v1444, %v1443
      %v1455 = vpack.c.b16 %v1446, %v1445
      %v1456 = vpack.c.b16 %v1448, %v1447
      %1465 = vmatprep.subr.bf16.mxu0 0
      %1466 = vmatpush1.bf16.msra.mxu0 %v1456
      %1467 = vmatprep.subr.bf16.mxu0 0
      %1468 = vmatpush1.bf16.msra.mxu0 %v1455
      %1469 = vmatprep.subr.bf16.mxu0 0
      %1470 = vmatpush1.bf16.msra.mxu0 %v1454
      %1471 = vmatprep.subr.bf16.mxu0 0
      %1472 = vmatpush1.bf16.msra.mxu0 %v1453
      %1473 = vmatprep.subr.bf16.mxu0 0
      %1474 = vmatpush1.bf16.msra.mxu0 %v1452
      %1475 = vmatprep.subr.bf16.mxu0 0
      %1476 = vmatpush1.bf16.msra.mxu0 %v1451
      %1477 = vmatprep.subr.bf16.mxu0 0
      %1478 = vmatpush1.bf16.msra.mxu0 %v1450
      %1479 = vmatprep.subr.bf16.mxu0 0
      %1480 = vmatpush1.bf16.msra.mxu0 %v1449
      %1481 = vmatprep.subr.bf16.mxu0 0
      %1482 = vmatpush2.bf16.msra.mxu0 0
      %1483 = vmatprep.subr.bf16.mxu0 0
      %1484 = vmatpush2.bf16.msra.mxu0 0
      %1485 = vmatprep.subr.bf16.mxu0 0
      %1486 = vmatpush2.bf16.msra.mxu0 0
      %1487 = vmatprep.subr.bf16.mxu0 0
      %1488 = vmatpush2.bf16.msra.mxu0 0
      %1489 = vmatprep.subr.bf16.mxu0 0
      %1490 = vmatpush2.bf16.msra.mxu0 0
      %1491 = vmatprep.subr.bf16.mxu0 0
      %1492 = vmatpush2.bf16.msra.mxu0 0
      %1493 = vmatprep.subr.bf16.mxu0 0
      %1494 = vmatpush2.bf16.msra.mxu0 0
      %1495 = vmatprep.subr.bf16.mxu0 0
      %1496 = vmatpush2.bf16.msra.mxu0 0
      %1497 = vmatprep.mubr.bf16.mxu0 0
      %1498 = vmatmul.mubr.bf16.gmra.mxu0 %v1362
      %v1499 = vpop.f32.mrf.mxu0
      %v1500 = vadd.f32 %v1415, %v1499
      %v1501 = vpop.f32.mrf.mxu0
      %v1502 = vpop.f32.mrf.mxu0
      %v1503 = vadd.f32 %v1415, %v1502
      %v1504 = vpop.f32.mrf.mxu0
      %1505 = vmatprep.mubr.bf16.mxu0 0
      %1506 = vmatmul.mubr.bf16.gmra.mxu0 %v1363
      %v1507 = vpop.f32.mrf.mxu0
      %v1508 = vadd.f32 %v1415, %v1507
      %v1509 = vpop.f32.mrf.mxu0
      %v1510 = vpop.f32.mrf.mxu0
      %v1511 = vadd.f32 %v1415, %v1510
      %v1512 = vpop.f32.mrf.mxu0
      %1513 = vmatprep.mubr.bf16.mxu0 0
      %1514 = vmatmul.mubr.bf16.gmra.mxu0 %v1364
      %v1515 = vpop.f32.mrf.mxu0
      %v1516 = vadd.f32 %v1415, %v1515
      %v1517 = vpop.f32.mrf.mxu0
      %v1518 = vpop.f32.mrf.mxu0
      %v1519 = vadd.f32 %v1415, %v1518
      %v1520 = vpop.f32.mrf.mxu0
      %1521 = vmatprep.mubr.bf16.mxu0 0
      %1522 = vmatmul.mubr.bf16.gmra.mxu0 %v1365
      %v1523 = vpop.f32.mrf.mxu0
      %v1524 = vadd.f32 %v1415, %v1523
      %v1525 = vpop.f32.mrf.mxu0
      %v1526 = vpop.f32.mrf.mxu0
      %v1527 = vadd.f32 %v1415, %v1526
      %v1528 = vpop.f32.mrf.mxu0
      %1529 = vmatprep.mubr.bf16.mxu0 0
      %1530 = vmatmul.mubr.bf16.gmra.mxu0 %v1366
      %v1531 = vpop.f32.mrf.mxu0
      %v1532 = vadd.f32 %v1415, %v1531
      %v1533 = vpop.f32.mrf.mxu0
      %v1534 = vpop.f32.mrf.mxu0
      %v1535 = vadd.f32 %v1415, %v1534
      %v1536 = vpop.f32.mrf.mxu0
      %1537 = vmatprep.mubr.bf16.mxu0 0
      %1538 = vmatmul.mubr.bf16.gmra.mxu0 %v1367
      %v1539 = vpop.f32.mrf.mxu0
      %v1540 = vadd.f32 %v1415, %v1539
      %v1541 = vpop.f32.mrf.mxu0
      %v1542 = vpop.f32.mrf.mxu0
      %v1543 = vadd.f32 %v1415, %v1542
      %v1544 = vpop.f32.mrf.mxu0
      %1545 = vmatprep.mubr.bf16.mxu0 0
      %1546 = vmatmul.mubr.bf16.gmra.mxu0 %v1368
      %v1547 = vpop.f32.mrf.mxu0
      %v1548 = vadd.f32 %v1415, %v1547
      %v1549 = vpop.f32.mrf.mxu0
      %v1550 = vpop.f32.mrf.mxu0
      %v1551 = vadd.f32 %v1415, %v1550
      %v1552 = vpop.f32.mrf.mxu0
      %1553 = vmatprep.mubr.bf16.mxu0 0
      %1554 = vmatmul.mubr.bf16.gmra.mxu0 %v1369
      %v1555 = vpop.f32.mrf.mxu0
      %v1556 = vadd.f32 %v1415, %v1555
      %v1557 = vpop.f32.mrf.mxu0
      %v1558 = vpop.f32.mrf.mxu0
      %v1559 = vadd.f32 %v1415, %v1558
      %v1560 = vpop.f32.mrf.mxu0
      %1561 = vmatprep.mubr.bf16.mxu0 0
      %1562 = vmatmul.mubr.bf16.gmra.mxu0 %v1370
      %v1563 = vpop.f32.mrf.mxu0
      %v1564 = vadd.f32 %v1415, %v1563
      %v1565 = vpop.f32.mrf.mxu0
      %v1566 = vpop.f32.mrf.mxu0
      %v1567 = vadd.f32 %v1415, %v1566
      %v1568 = vpop.f32.mrf.mxu0
      %1569 = vmatprep.mubr.bf16.mxu0 0
      %1570 = vmatmul.mubr.bf16.gmra.mxu0 %v1371
      %v1571 = vpop.f32.mrf.mxu0
      %v1572 = vadd.f32 %v1415, %v1571
      %v1573 = vpop.f32.mrf.mxu0
      %v1574 = vpop.f32.mrf.mxu0
      %v1575 = vadd.f32 %v1415, %v1574
      %v1576 = vpop.f32.mrf.mxu0
      %1577 = vmatprep.mubr.bf16.mxu0 0
      %1578 = vmatmul.mubr.bf16.gmra.mxu0 %v1372
      %v1579 = vpop.f32.mrf.mxu0
      %v1580 = vadd.f32 %v1415, %v1579
      %v1581 = vpop.f32.mrf.mxu0
      %v1582 = vpop.f32.mrf.mxu0
      %v1583 = vadd.f32 %v1415, %v1582
      %v1584 = vpop.f32.mrf.mxu0
      %1585 = vmatprep.mubr.bf16.mxu0 0
      %1586 = vmatmul.mubr.bf16.gmra.mxu0 %v1373
      %v1587 = vpop.f32.mrf.mxu0
      %v1588 = vadd.f32 %v1415, %v1587
      %v1589 = vpop.f32.mrf.mxu0
      %v1590 = vpop.f32.mrf.mxu0
      %v1591 = vadd.f32 %v1415, %v1590
      %v1592 = vpop.f32.mrf.mxu0
      %1593 = vmatprep.mubr.bf16.mxu0 0
      %1594 = vmatmul.mubr.bf16.gmra.mxu0 %v1374
      %v1595 = vpop.f32.mrf.mxu0
      %v1596 = vadd.f32 %v1415, %v1595
      %v1597 = vpop.f32.mrf.mxu0
      %v1598 = vpop.f32.mrf.mxu0
      %v1599 = vadd.f32 %v1415, %v1598
      %v1600 = vpop.f32.mrf.mxu0
      %1601 = vmatprep.mubr.bf16.mxu0 0
      %1602 = vmatmul.mubr.bf16.gmra.mxu0 %v1375
      %v1603 = vpop.f32.mrf.mxu0
      %v1604 = vadd.f32 %v1415, %v1603
      %v1605 = vpop.f32.mrf.mxu0
      %v1606 = vpop.f32.mrf.mxu0
      %v1607 = vadd.f32 %v1415, %v1606
      %v1608 = vpop.f32.mrf.mxu0
      %1609 = vmatprep.mubr.bf16.mxu0 0
      %1610 = vmatmul.mubr.bf16.gmra.mxu0 %v1376
      %v1611 = vpop.f32.mrf.mxu0
      %v1612 = vadd.f32 %v1415, %v1611
      %v1613 = vpop.f32.mrf.mxu0
      %v1614 = vpop.f32.mrf.mxu0
      %v1615 = vadd.f32 %v1415, %v1614
      %v1616 = vpop.f32.mrf.mxu0
      %1617 = vmatprep.mubr.bf16.mxu0 0
      %1618 = vmatmul.mubr.bf16.gmra.mxu0 %v1377
      %v1619 = vpop.f32.mrf.mxu0
      %v1620 = vadd.f32 %v1415, %v1619
      %v1621 = vpop.f32.mrf.mxu0
      %v1622 = vpop.f32.mrf.mxu0
      %v1623 = vadd.f32 %v1415, %v1622
      %v1624 = vpop.f32.mrf.mxu0
      %1625 = vmatprep.mubr.bf16.mxu0 0
      %1626 = vmatmul.mubr.bf16.gmra.mxu0 %v1378
      %v1627 = vpop.f32.mrf.mxu0
      %v1628 = vadd.f32 %v1415, %v1627
      %v1629 = vpop.f32.mrf.mxu0
      %v1630 = vpop.f32.mrf.mxu0
      %v1631 = vadd.f32 %v1415, %v1630
      %v1632 = vpop.f32.mrf.mxu0
      %1633 = vmatprep.mubr.bf16.mxu0 0
      %1634 = vmatmul.mubr.bf16.gmra.mxu0 %v1379
      %v1635 = vpop.f32.mrf.mxu0
      %v1636 = vadd.f32 %v1415, %v1635
      %v1637 = vpop.f32.mrf.mxu0
      %v1638 = vpop.f32.mrf.mxu0
      %v1639 = vadd.f32 %v1415, %v1638
      %v1640 = vpop.f32.mrf.mxu0
      %1641 = vmatprep.mubr.bf16.mxu0 0
      %1642 = vmatmul.mubr.bf16.gmra.mxu0 %v1380
      %v1643 = vpop.f32.mrf.mxu0
      %v1644 = vadd.f32 %v1415, %v1643
      %v1645 = vpop.f32.mrf.mxu0
      %v1646 = vpop.f32.mrf.mxu0
      %v1647 = vadd.f32 %v1415, %v1646
      %v1648 = vpop.f32.mrf.mxu0
      %1649 = vmatprep.mubr.bf16.mxu0 0
      %1650 = vmatmul.mubr.bf16.gmra.mxu0 %v1381
      %v1651 = vpop.f32.mrf.mxu0
      %v1652 = vadd.f32 %v1415, %v1651
      %v1653 = vpop.f32.mrf.mxu0
      %v1654 = vpop.f32.mrf.mxu0
      %v1655 = vadd.f32 %v1415, %v1654
      %v1656 = vpop.f32.mrf.mxu0
      %1657 = vmatprep.mubr.bf16.mxu0 0
      %1658 = vmatmul.mubr.bf16.gmra.mxu0 %v1382
      %v1659 = vpop.f32.mrf.mxu0
      %v1660 = vadd.f32 %v1415, %v1659
      %v1661 = vpop.f32.mrf.mxu0
      %v1662 = vpop.f32.mrf.mxu0
      %v1663 = vadd.f32 %v1415, %v1662
      %v1664 = vpop.f32.mrf.mxu0
      %1665 = vmatprep.mubr.bf16.mxu0 0
      %1666 = vmatmul.mubr.bf16.gmra.mxu0 %v1383
      %v1667 = vpop.f32.mrf.mxu0
      %v1668 = vadd.f32 %v1415, %v1667
      %v1669 = vpop.f32.mrf.mxu0
      %v1670 = vpop.f32.mrf.mxu0
      %v1671 = vadd.f32 %v1415, %v1670
      %v1672 = vpop.f32.mrf.mxu0
      %1673 = vmatprep.mubr.bf16.mxu0 0
      %1674 = vmatmul.mubr.bf16.gmra.mxu0 %v1384
      %v1675 = vpop.f32.mrf.mxu0
      %v1676 = vadd.f32 %v1415, %v1675
      %v1677 = vpop.f32.mrf.mxu0
      %v1678 = vpop.f32.mrf.mxu0
      %v1679 = vadd.f32 %v1415, %v1678
      %v1680 = vpop.f32.mrf.mxu0
      %1681 = vmatprep.mubr.bf16.mxu0 0
      %1682 = vmatmul.mubr.bf16.gmra.mxu0 %v1385
      %v1683 = vpop.f32.mrf.mxu0
      %v1684 = vadd.f32 %v1415, %v1683
      %v1685 = vpop.f32.mrf.mxu0
      %v1686 = vpop.f32.mrf.mxu0
      %v1687 = vadd.f32 %v1415, %v1686
      %v1688 = vpop.f32.mrf.mxu0
      %1689 = vmatprep.mubr.bf16.mxu0 0
      %1690 = vmatmul.mubr.bf16.gmra.mxu0 %v1386
      %v1691 = vpop.f32.mrf.mxu0
      %v1692 = vadd.f32 %v1415, %v1691
      %v1693 = vpop.f32.mrf.mxu0
      %v1694 = vpop.f32.mrf.mxu0
      %v1695 = vadd.f32 %v1415, %v1694
      %v1696 = vpop.f32.mrf.mxu0
      %1697 = vmatprep.mubr.bf16.mxu0 0
      %1698 = vmatmul.mubr.bf16.gmra.mxu0 %v1387
      %v1699 = vpop.f32.mrf.mxu0
      %v1700 = vadd.f32 %v1415, %v1699
      %v1701 = vpop.f32.mrf.mxu0
      %v1702 = vpop.f32.mrf.mxu0
      %v1703 = vadd.f32 %v1415, %v1702
      %v1704 = vpop.f32.mrf.mxu0
      %1705 = vmatprep.mubr.bf16.mxu0 0
      %1706 = vmatmul.mubr.bf16.gmra.mxu0 %v1388
      %v1707 = vpop.f32.mrf.mxu0
      %v1708 = vadd.f32 %v1415, %v1707
      %v1709 = vpop.f32.mrf.mxu0
      %v1710 = vpop.f32.mrf.mxu0
      %v1711 = vadd.f32 %v1415, %v1710
      %v1712 = vpop.f32.mrf.mxu0
      %1713 = vmatprep.mubr.bf16.mxu0 0
      %1714 = vmatmul.mubr.bf16.gmra.mxu0 %v1389
      %v1715 = vpop.f32.mrf.mxu0
      %v1716 = vadd.f32 %v1415, %v1715
      %v1717 = vpop.f32.mrf.mxu0
      %v1718 = vpop.f32.mrf.mxu0
      %v1719 = vadd.f32 %v1415, %v1718
      %v1720 = vpop.f32.mrf.mxu0
      %1721 = vmatprep.mubr.bf16.mxu0 0
      %1722 = vmatmul.mubr.bf16.gmra.mxu0 %v1390
      %v1723 = vpop.f32.mrf.mxu0
      %v1724 = vadd.f32 %v1415, %v1723
      %v1725 = vpop.f32.mrf.mxu0
      %v1726 = vpop.f32.mrf.mxu0
      %v1727 = vadd.f32 %v1415, %v1726
      %v1728 = vpop.f32.mrf.mxu0
      %1729 = vmatprep.mubr.bf16.mxu0 0
      %1730 = vmatmul.mubr.bf16.gmra.mxu0 %v1391
      %v1731 = vpop.f32.mrf.mxu0
      %v1732 = vadd.f32 %v1415, %v1731
      %v1733 = vpop.f32.mrf.mxu0
      %v1734 = vpop.f32.mrf.mxu0
      %v1735 = vadd.f32 %v1415, %v1734
      %v1736 = vpop.f32.mrf.mxu0
      %1737 = vmatprep.mubr.bf16.mxu0 0
      %1738 = vmatmul.mubr.bf16.gmra.mxu0 %v1392
      %v1739 = vpop.f32.mrf.mxu0
      %v1740 = vadd.f32 %v1415, %v1739
      %v1741 = vpop.f32.mrf.mxu0
      %v1742 = vpop.f32.mrf.mxu0
      %v1743 = vadd.f32 %v1415, %v1742
      %v1744 = vpop.f32.mrf.mxu0
      %1745 = vmatprep.mubr.bf16.mxu0 0
      %1746 = vmatmul.mubr.bf16.gmra.mxu0 %v1393
      %v1747 = vpop.f32.mrf.mxu0
      %v1748 = vadd.f32 %v1415, %v1747
      %v1749 = vpop.f32.mrf.mxu0
      %v1750 = vpop.f32.mrf.mxu0
      %v1751 = vadd.f32 %v1415, %v1750
      %v1752 = vpop.f32.mrf.mxu0
      %1753 = vdwg.mxu0
      %v1754 = vmax.f32 %v1500, 0.0
      %v1755 = vmax.f32 %v1503, 0.0
      %v1756 = vmax.f32 %v1508, 0.0
      %v1757 = vmax.f32 %v1511, 0.0
      %v1758 = vmax.f32 %v1516, 0.0
      %v1759 = vmax.f32 %v1519, 0.0
      %v1760 = vmax.f32 %v1524, 0.0
      %v1761 = vmax.f32 %v1527, 0.0
      %v1762 = vmax.f32 %v1532, 0.0
      %v1763 = vmax.f32 %v1535, 0.0
      %v1764 = vmax.f32 %v1540, 0.0
      %v1765 = vmax.f32 %v1543, 0.0
      %v1766 = vmax.f32 %v1548, 0.0
      %v1767 = vmax.f32 %v1551, 0.0
      %v1768 = vmax.f32 %v1556, 0.0
      %v1769 = vmax.f32 %v1559, 0.0
      %v1770 = vmax.f32 %v1564, 0.0
      %v1771 = vmax.f32 %v1567, 0.0
      %v1772 = vmax.f32 %v1572, 0.0
      %v1773 = vmax.f32 %v1575, 0.0
      %v1774 = vmax.f32 %v1580, 0.0
      %v1775 = vmax.f32 %v1583, 0.0
      %v1776 = vmax.f32 %v1588, 0.0
      %v1777 = vmax.f32 %v1591, 0.0
      %v1778 = vmax.f32 %v1596, 0.0
      %v1779 = vmax.f32 %v1599, 0.0
      %v1780 = vmax.f32 %v1604, 0.0
      %v1781 = vmax.f32 %v1607, 0.0
      %v1782 = vmax.f32 %v1612, 0.0
      %v1783 = vmax.f32 %v1615, 0.0
      %v1784 = vmax.f32 %v1620, 0.0
      %v1785 = vmax.f32 %v1623, 0.0
      %v1786 = vmax.f32 %v1628, 0.0
      %v1787 = vmax.f32 %v1631, 0.0
      %v1788 = vmax.f32 %v1636, 0.0
      %v1789 = vmax.f32 %v1639, 0.0
      %v1790 = vmax.f32 %v1644, 0.0
      %v1791 = vmax.f32 %v1647, 0.0
      %v1792 = vmax.f32 %v1652, 0.0
      %v1793 = vmax.f32 %v1655, 0.0
      %v1794 = vmax.f32 %v1660, 0.0
      %v1795 = vmax.f32 %v1663, 0.0
      %v1796 = vmax.f32 %v1668, 0.0
      %v1797 = vmax.f32 %v1671, 0.0
      %v1798 = vmax.f32 %v1676, 0.0
      %v1799 = vmax.f32 %v1679, 0.0
      %v1800 = vmax.f32 %v1684, 0.0
      %v1801 = vmax.f32 %v1687, 0.0
      %v1802 = vmax.f32 %v1692, 0.0
      %v1803 = vmax.f32 %v1695, 0.0
      %v1804 = vmax.f32 %v1700, 0.0
      %v1805 = vmax.f32 %v1703, 0.0
      %v1806 = vmax.f32 %v1708, 0.0
      %v1807 = vmax.f32 %v1711, 0.0
      %v1808 = vmax.f32 %v1716, 0.0
      %v1809 = vmax.f32 %v1719, 0.0
      %v1810 = vmax.f32 %v1724, 0.0
      %v1811 = vmax.f32 %v1727, 0.0
      %v1812 = vmax.f32 %v1732, 0.0
      %v1813 = vmax.f32 %v1735, 0.0
      %v1814 = vmax.f32 %v1740, 0.0
      %v1815 = vmax.f32 %v1743, 0.0
      %v1816 = vmax.f32 %v1748, 0.0
      %v1817 = vmax.f32 %v1751, 0.0
      %v1818 = vpack.c.bf16 %v1755, %v1754
      %v1819 = vpack.c.bf16 %v1757, %v1756
      %v1820 = vpack.c.bf16 %v1759, %v1758
      %v1821 = vpack.c.bf16 %v1761, %v1760
      %v1822 = vpack.c.bf16 %v1763, %v1762
      %v1823 = vpack.c.bf16 %v1765, %v1764
      %v1824 = vpack.c.bf16 %v1767, %v1766
      %v1825 = vpack.c.bf16 %v1769, %v1768
      %v1826 = vpack.c.bf16 %v1771, %v1770
      %v1827 = vpack.c.bf16 %v1773, %v1772
      %v1828 = vpack.c.bf16 %v1775, %v1774
      %v1829 = vpack.c.bf16 %v1777, %v1776
      %v1830 = vpack.c.bf16 %v1779, %v1778
      %v1831 = vpack.c.bf16 %v1781, %v1780
      %v1832 = vpack.c.bf16 %v1783, %v1782
      %v1833 = vpack.c.bf16 %v1785, %v1784
      %v1834 = vpack.c.bf16 %v1787, %v1786
      %v1835 = vpack.c.bf16 %v1789, %v1788
      %v1836 = vpack.c.bf16 %v1791, %v1790
      %v1837 = vpack.c.bf16 %v1793, %v1792
      %v1838 = vpack.c.bf16 %v1795, %v1794
      %v1839 = vpack.c.bf16 %v1797, %v1796
      %v1840 = vpack.c.bf16 %v1799, %v1798
      %v1841 = vpack.c.bf16 %v1801, %v1800
      %v1842 = vpack.c.bf16 %v1803, %v1802
      %v1843 = vpack.c.bf16 %v1805, %v1804
      %v1844 = vpack.c.bf16 %v1807, %v1806
      %v1845 = vpack.c.bf16 %v1809, %v1808
      %v1846 = vpack.c.bf16 %v1811, %v1810
      %v1847 = vpack.c.bf16 %v1813, %v1812
      %v1848 = vpack.c.bf16 %v1815, %v1814
      %v1849 = vpack.c.bf16 %v1817, %v1816
      %v1850 = vld [vmem:[%s7] sm:$0xf]
      %v1851 = vld [vmem:[%s7 + $0x4] sm:$0xf]
      %v1852 = vld [vmem:[%s7 + $0x8] sm:$0xf]
      %v1853 = vld [vmem:[%s7 + $0xc] sm:$0xf]
      %v1854 = vld [vmem:[%s7 + $0x10] sm:$0xf]
      %v1855 = vld [vmem:[%s7 + $0x14] sm:$0xf]
      %v1856 = vld [vmem:[%s7 + $0x18] sm:$0xf]
      %v1857 = vld [vmem:[%s7 + $0x1c] sm:$0xf]
      %v1858 = vld [vmem:[%s7 + $0x20] sm:$0xf]
      %v1859 = vld [vmem:[%s7 + $0x24] sm:$0xf]
      %v1860 = vld [vmem:[%s7 + $0x28] sm:$0xf]
      %v1861 = vld [vmem:[%s7 + $0x2c] sm:$0xf]
      %v1862 = vld [vmem:[%s7 + $0x30] sm:$0xf]
      %v1863 = vld [vmem:[%s7 + $0x34] sm:$0xf]
      %v1864 = vld [vmem:[%s7 + $0x38] sm:$0xf]
      %v1865 = vld [vmem:[%s7 + $0x3c] sm:$0xf]
      %v1866 = vld [vmem:[%s8] sm:$0x1]
      %v1868 = vlaneseq
      %v1869 = vshrl.u32 %v1868, 7
      %v1870 = vsub.s32 0, %v1869
      %v1871 = vrot.slane %v1866, %v1870
      %v1889 = vunpack.c.l.b16 %v1850
      %v1890 = vunpack.c.l.b16 %v1851
      %v1891 = vunpack.c.l.b16 %v1852
      %v1892 = vunpack.c.l.b16 %v1853
      %v1893 = vunpack.c.l.b16 %v1854
      %v1894 = vunpack.c.l.b16 %v1855
      %v1895 = vunpack.c.l.b16 %v1856
      %v1896 = vunpack.c.l.b16 %v1857
      %v1897 = vunpack.c.l.b16 %v1858
      %v1898 = vunpack.c.l.b16 %v1859
      %v1899 = vunpack.c.l.b16 %v1860
      %v1900 = vunpack.c.l.b16 %v1861
      %v1901 = vunpack.c.l.b16 %v1862
      %v1902 = vunpack.c.l.b16 %v1863
      %v1903 = vunpack.c.l.b16 %v1864
      %v1904 = vunpack.c.l.b16 %v1865
      %v1905 = vpack.c.b16 %v1890, %v1889
      %v1906 = vpack.c.b16 %v1892, %v1891
      %v1907 = vpack.c.b16 %v1894, %v1893
      %v1908 = vpack.c.b16 %v1896, %v1895
      %v1909 = vpack.c.b16 %v1898, %v1897
      %v1910 = vpack.c.b16 %v1900, %v1899
      %v1911 = vpack.c.b16 %v1902, %v1901
      %v1912 = vpack.c.b16 %v1904, %v1903
      %1921 = vmatprep.subr.bf16.mxu0 0
      %1922 = vmatpush1.bf16.msra.mxu0 %v1912
      %1923 = vmatprep.subr.bf16.mxu0 0
      %1924 = vmatpush1.bf16.msra.mxu0 %v1911
      %1925 = vmatprep.subr.bf16.mxu0 0
      %1926 = vmatpush1.bf16.msra.mxu0 %v1910
      %1927 = vmatprep.subr.bf16.mxu0 0
      %1928 = vmatpush1.bf16.msra.mxu0 %v1909
      %1929 = vmatprep.subr.bf16.mxu0 0
      %1930 = vmatpush1.bf16.msra.mxu0 %v1908
      %1931 = vmatprep.subr.bf16.mxu0 0
      %1932 = vmatpush1.bf16.msra.mxu0 %v1907
      %1933 = vmatprep.subr.bf16.mxu0 0
      %1934 = vmatpush1.bf16.msra.mxu0 %v1906
      %1935 = vmatprep.subr.bf16.mxu0 0
      %1936 = vmatpush1.bf16.msra.mxu0 %v1905
      %1937 = vmatprep.subr.bf16.mxu0 0
      %1938 = vmatpush2.bf16.msra.mxu0 0
      %1939 = vmatprep.subr.bf16.mxu0 0
      %1940 = vmatpush2.bf16.msra.mxu0 0
      %1941 = vmatprep.subr.bf16.mxu0 0
      %1942 = vmatpush2.bf16.msra.mxu0 0
      %1943 = vmatprep.subr.bf16.mxu0 0
      %1944 = vmatpush2.bf16.msra.mxu0 0
      %1945 = vmatprep.subr.bf16.mxu0 0
      %1946 = vmatpush2.bf16.msra.mxu0 0
      %1947 = vmatprep.subr.bf16.mxu0 0
      %1948 = vmatpush2.bf16.msra.mxu0 0
      %1949 = vmatprep.subr.bf16.mxu0 0
      %1950 = vmatpush2.bf16.msra.mxu0 0
      %1951 = vmatprep.subr.bf16.mxu0 0
      %1952 = vmatpush2.bf16.msra.mxu0 0
      %1953 = vmatprep.mubr.bf16.mxu0 0
      %1954 = vmatmul.mubr.bf16.gmra.mxu0 %v1818
      %v1955 = vpop.f32.mrf.mxu0
      %v1956 = vadd.f32 %v1871, %v1955
      %v1957 = vpop.f32.mrf.mxu0
      %v1958 = vpop.f32.mrf.mxu0
      %v1959 = vadd.f32 %v1871, %v1958
      %v1960 = vpop.f32.mrf.mxu0
      %1961 = vmatprep.mubr.bf16.mxu0 0
      %1962 = vmatmul.mubr.bf16.gmra.mxu0 %v1819
      %v1963 = vpop.f32.mrf.mxu0
      %v1964 = vadd.f32 %v1871, %v1963
      %v1965 = vpop.f32.mrf.mxu0
      %v1966 = vpop.f32.mrf.mxu0
      %v1967 = vadd.f32 %v1871, %v1966
      %v1968 = vpop.f32.mrf.mxu0
      %1969 = vmatprep.mubr.bf16.mxu0 0
      %1970 = vmatmul.mubr.bf16.gmra.mxu0 %v1820
      %v1971 = vpop.f32.mrf.mxu0
      %v1972 = vadd.f32 %v1871, %v1971
      %v1973 = vpop.f32.mrf.mxu0
      %v1974 = vpop.f32.mrf.mxu0
      %v1975 = vadd.f32 %v1871, %v1974
      %v1976 = vpop.f32.mrf.mxu0
      %1977 = vmatprep.mubr.bf16.mxu0 0
      %1978 = vmatmul.mubr.bf16.gmra.mxu0 %v1821
      %v1979 = vpop.f32.mrf.mxu0
      %v1980 = vadd.f32 %v1871, %v1979
      %v1981 = vpop.f32.mrf.mxu0
      %v1982 = vpop.f32.mrf.mxu0
      %v1983 = vadd.f32 %v1871, %v1982
      %v1984 = vpop.f32.mrf.mxu0
      %1985 = vmatprep.mubr.bf16.mxu0 0
      %1986 = vmatmul.mubr.bf16.gmra.mxu0 %v1822
      %v1987 = vpop.f32.mrf.mxu0
      %v1988 = vadd.f32 %v1871, %v1987
      %v1989 = vpop.f32.mrf.mxu0
      %v1990 = vpop.f32.mrf.mxu0
      %v1991 = vadd.f32 %v1871, %v1990
      %v1992 = vpop.f32.mrf.mxu0
      %1993 = vmatprep.mubr.bf16.mxu0 0
      %1994 = vmatmul.mubr.bf16.gmra.mxu0 %v1823
      %v1995 = vpop.f32.mrf.mxu0
      %v1996 = vadd.f32 %v1871, %v1995
      %v1997 = vpop.f32.mrf.mxu0
      %v1998 = vpop.f32.mrf.mxu0
      %v1999 = vadd.f32 %v1871, %v1998
      %v2000 = vpop.f32.mrf.mxu0
      %2001 = vmatprep.mubr.bf16.mxu0 0
      %2002 = vmatmul.mubr.bf16.gmra.mxu0 %v1824
      %v2003 = vpop.f32.mrf.mxu0
      %v2004 = vadd.f32 %v1871, %v2003
      %v2005 = vpop.f32.mrf.mxu0
      %v2006 = vpop.f32.mrf.mxu0
      %v2007 = vadd.f32 %v1871, %v2006
      %v2008 = vpop.f32.mrf.mxu0
      %2009 = vmatprep.mubr.bf16.mxu0 0
      %2010 = vmatmul.mubr.bf16.gmra.mxu0 %v1825
      %v2011 = vpop.f32.mrf.mxu0
      %v2012 = vadd.f32 %v1871, %v2011
      %v2013 = vpop.f32.mrf.mxu0
      %v2014 = vpop.f32.mrf.mxu0
      %v2015 = vadd.f32 %v1871, %v2014
      %v2016 = vpop.f32.mrf.mxu0
      %2017 = vmatprep.mubr.bf16.mxu0 0
      %2018 = vmatmul.mubr.bf16.gmra.mxu0 %v1826
      %v2019 = vpop.f32.mrf.mxu0
      %v2020 = vadd.f32 %v1871, %v2019
      %v2021 = vpop.f32.mrf.mxu0
      %v2022 = vpop.f32.mrf.mxu0
      %v2023 = vadd.f32 %v1871, %v2022
      %v2024 = vpop.f32.mrf.mxu0
      %2025 = vmatprep.mubr.bf16.mxu0 0
      %2026 = vmatmul.mubr.bf16.gmra.mxu0 %v1827
      %v2027 = vpop.f32.mrf.mxu0
      %v2028 = vadd.f32 %v1871, %v2027
      %v2029 = vpop.f32.mrf.mxu0
      %v2030 = vpop.f32.mrf.mxu0
      %v2031 = vadd.f32 %v1871, %v2030
      %v2032 = vpop.f32.mrf.mxu0
      %2033 = vmatprep.mubr.bf16.mxu0 0
      %2034 = vmatmul.mubr.bf16.gmra.mxu0 %v1828
      %v2035 = vpop.f32.mrf.mxu0
      %v2036 = vadd.f32 %v1871, %v2035
      %v2037 = vpop.f32.mrf.mxu0
      %v2038 = vpop.f32.mrf.mxu0
      %v2039 = vadd.f32 %v1871, %v2038
      %v2040 = vpop.f32.mrf.mxu0
      %2041 = vmatprep.mubr.bf16.mxu0 0
      %2042 = vmatmul.mubr.bf16.gmra.mxu0 %v1829
      %v2043 = vpop.f32.mrf.mxu0
      %v2044 = vadd.f32 %v1871, %v2043
      %v2045 = vpop.f32.mrf.mxu0
      %v2046 = vpop.f32.mrf.mxu0
      %v2047 = vadd.f32 %v1871, %v2046
      %v2048 = vpop.f32.mrf.mxu0
      %2049 = vmatprep.mubr.bf16.mxu0 0
      %2050 = vmatmul.mubr.bf16.gmra.mxu0 %v1830
      %v2051 = vpop.f32.mrf.mxu0
      %v2052 = vadd.f32 %v1871, %v2051
      %v2053 = vpop.f32.mrf.mxu0
      %v2054 = vpop.f32.mrf.mxu0
      %v2055 = vadd.f32 %v1871, %v2054
      %v2056 = vpop.f32.mrf.mxu0
      %2057 = vmatprep.mubr.bf16.mxu0 0
      %2058 = vmatmul.mubr.bf16.gmra.mxu0 %v1831
      %v2059 = vpop.f32.mrf.mxu0
      %v2060 = vadd.f32 %v1871, %v2059
      %v2061 = vpop.f32.mrf.mxu0
      %v2062 = vpop.f32.mrf.mxu0
      %v2063 = vadd.f32 %v1871, %v2062
      %v2064 = vpop.f32.mrf.mxu0
      %2065 = vmatprep.mubr.bf16.mxu0 0
      %2066 = vmatmul.mubr.bf16.gmra.mxu0 %v1832
      %v2067 = vpop.f32.mrf.mxu0
      %v2068 = vadd.f32 %v1871, %v2067
      %v2069 = vpop.f32.mrf.mxu0
      %v2070 = vpop.f32.mrf.mxu0
      %v2071 = vadd.f32 %v1871, %v2070
      %v2072 = vpop.f32.mrf.mxu0
      %2073 = vmatprep.mubr.bf16.mxu0 0
      %2074 = vmatmul.mubr.bf16.gmra.mxu0 %v1833
      %v2075 = vpop.f32.mrf.mxu0
      %v2076 = vadd.f32 %v1871, %v2075
      %v2077 = vpop.f32.mrf.mxu0
      %v2078 = vpop.f32.mrf.mxu0
      %v2079 = vadd.f32 %v1871, %v2078
      %v2080 = vpop.f32.mrf.mxu0
      %2081 = vmatprep.mubr.bf16.mxu0 0
      %2082 = vmatmul.mubr.bf16.gmra.mxu0 %v1834
      %v2083 = vpop.f32.mrf.mxu0
      %v2084 = vadd.f32 %v1871, %v2083
      %v2085 = vpop.f32.mrf.mxu0
      %v2086 = vpop.f32.mrf.mxu0
      %v2087 = vadd.f32 %v1871, %v2086
      %v2088 = vpop.f32.mrf.mxu0
      %2089 = vmatprep.mubr.bf16.mxu0 0
      %2090 = vmatmul.mubr.bf16.gmra.mxu0 %v1835
      %v2091 = vpop.f32.mrf.mxu0
      %v2092 = vadd.f32 %v1871, %v2091
      %v2093 = vpop.f32.mrf.mxu0
      %v2094 = vpop.f32.mrf.mxu0
      %v2095 = vadd.f32 %v1871, %v2094
      %v2096 = vpop.f32.mrf.mxu0
      %2097 = vmatprep.mubr.bf16.mxu0 0
      %2098 = vmatmul.mubr.bf16.gmra.mxu0 %v1836
      %v2099 = vpop.f32.mrf.mxu0
      %v2100 = vadd.f32 %v1871, %v2099
      %v2101 = vpop.f32.mrf.mxu0
      %v2102 = vpop.f32.mrf.mxu0
      %v2103 = vadd.f32 %v1871, %v2102
      %v2104 = vpop.f32.mrf.mxu0
      %2105 = vmatprep.mubr.bf16.mxu0 0
      %2106 = vmatmul.mubr.bf16.gmra.mxu0 %v1837
      %v2107 = vpop.f32.mrf.mxu0
      %v2108 = vadd.f32 %v1871, %v2107
      %v2109 = vpop.f32.mrf.mxu0
      %v2110 = vpop.f32.mrf.mxu0
      %v2111 = vadd.f32 %v1871, %v2110
      %v2112 = vpop.f32.mrf.mxu0
      %2113 = vmatprep.mubr.bf16.mxu0 0
      %2114 = vmatmul.mubr.bf16.gmra.mxu0 %v1838
      %v2115 = vpop.f32.mrf.mxu0
      %v2116 = vadd.f32 %v1871, %v2115
      %v2117 = vpop.f32.mrf.mxu0
      %v2118 = vpop.f32.mrf.mxu0
      %v2119 = vadd.f32 %v1871, %v2118
      %v2120 = vpop.f32.mrf.mxu0
      %2121 = vmatprep.mubr.bf16.mxu0 0
      %2122 = vmatmul.mubr.bf16.gmra.mxu0 %v1839
      %v2123 = vpop.f32.mrf.mxu0
      %v2124 = vadd.f32 %v1871, %v2123
      %v2125 = vpop.f32.mrf.mxu0
      %v2126 = vpop.f32.mrf.mxu0
      %v2127 = vadd.f32 %v1871, %v2126
      %v2128 = vpop.f32.mrf.mxu0
      %2129 = vmatprep.mubr.bf16.mxu0 0
      %2130 = vmatmul.mubr.bf16.gmra.mxu0 %v1840
      %v2131 = vpop.f32.mrf.mxu0
      %v2132 = vadd.f32 %v1871, %v2131
      %v2133 = vpop.f32.mrf.mxu0
      %v2134 = vpop.f32.mrf.mxu0
      %v2135 = vadd.f32 %v1871, %v2134
      %v2136 = vpop.f32.mrf.mxu0
      %2137 = vmatprep.mubr.bf16.mxu0 0
      %2138 = vmatmul.mubr.bf16.gmra.mxu0 %v1841
      %v2139 = vpop.f32.mrf.mxu0
      %v2140 = vadd.f32 %v1871, %v2139
      %v2141 = vpop.f32.mrf.mxu0
      %v2142 = vpop.f32.mrf.mxu0
      %v2143 = vadd.f32 %v1871, %v2142
      %v2144 = vpop.f32.mrf.mxu0
      %2145 = vmatprep.mubr.bf16.mxu0 0
      %2146 = vmatmul.mubr.bf16.gmra.mxu0 %v1842
      %v2147 = vpop.f32.mrf.mxu0
      %v2148 = vadd.f32 %v1871, %v2147
      %v2149 = vpop.f32.mrf.mxu0
      %v2150 = vpop.f32.mrf.mxu0
      %v2151 = vadd.f32 %v1871, %v2150
      %v2152 = vpop.f32.mrf.mxu0
      %2153 = vmatprep.mubr.bf16.mxu0 0
      %2154 = vmatmul.mubr.bf16.gmra.mxu0 %v1843
      %v2155 = vpop.f32.mrf.mxu0
      %v2156 = vadd.f32 %v1871, %v2155
      %v2157 = vpop.f32.mrf.mxu0
      %v2158 = vpop.f32.mrf.mxu0
      %v2159 = vadd.f32 %v1871, %v2158
      %v2160 = vpop.f32.mrf.mxu0
      %2161 = vmatprep.mubr.bf16.mxu0 0
      %2162 = vmatmul.mubr.bf16.gmra.mxu0 %v1844
      %v2163 = vpop.f32.mrf.mxu0
      %v2164 = vadd.f32 %v1871, %v2163
      %v2165 = vpop.f32.mrf.mxu0
      %v2166 = vpop.f32.mrf.mxu0
      %v2167 = vadd.f32 %v1871, %v2166
      %v2168 = vpop.f32.mrf.mxu0
      %2169 = vmatprep.mubr.bf16.mxu0 0
      %2170 = vmatmul.mubr.bf16.gmra.mxu0 %v1845
      %v2171 = vpop.f32.mrf.mxu0
      %v2172 = vadd.f32 %v1871, %v2171
      %v2173 = vpop.f32.mrf.mxu0
      %v2174 = vpop.f32.mrf.mxu0
      %v2175 = vadd.f32 %v1871, %v2174
      %v2176 = vpop.f32.mrf.mxu0
      %2177 = vmatprep.mubr.bf16.mxu0 0
      %2178 = vmatmul.mubr.bf16.gmra.mxu0 %v1846
      %v2179 = vpop.f32.mrf.mxu0
      %v2180 = vadd.f32 %v1871, %v2179
      %v2181 = vpop.f32.mrf.mxu0
      %v2182 = vpop.f32.mrf.mxu0
      %v2183 = vadd.f32 %v1871, %v2182
      %v2184 = vpop.f32.mrf.mxu0
      %2185 = vmatprep.mubr.bf16.mxu0 0
      %2186 = vmatmul.mubr.bf16.gmra.mxu0 %v1847
      %v2187 = vpop.f32.mrf.mxu0
      %v2188 = vadd.f32 %v1871, %v2187
      %v2189 = vpop.f32.mrf.mxu0
      %v2190 = vpop.f32.mrf.mxu0
      %v2191 = vadd.f32 %v1871, %v2190
      %v2192 = vpop.f32.mrf.mxu0
      %2193 = vmatprep.mubr.bf16.mxu0 0
      %2194 = vmatmul.mubr.bf16.gmra.mxu0 %v1848
      %v2195 = vpop.f32.mrf.mxu0
      %v2196 = vadd.f32 %v1871, %v2195
      %v2197 = vpop.f32.mrf.mxu0
      %v2198 = vpop.f32.mrf.mxu0
      %v2199 = vadd.f32 %v1871, %v2198
      %v2200 = vpop.f32.mrf.mxu0
      %2201 = vmatprep.mubr.bf16.mxu0 0
      %2202 = vmatmul.mubr.bf16.gmra.mxu0 %v1849
      %v2203 = vpop.f32.mrf.mxu0
      %v2204 = vadd.f32 %v1871, %v2203
      %v2205 = vpop.f32.mrf.mxu0
      %v2206 = vpop.f32.mrf.mxu0
      %v2207 = vadd.f32 %v1871, %v2206
      %v2208 = vpop.f32.mrf.mxu0
      %2209 = vdwg.mxu0
      %2210 = vxpose.xlu0.b32.start [1/16] %v1956, 128
      %2211 = vxpose.xlu0.b32.cont [2/16] %v1959, 128
      %2212 = vxpose.xlu0.b32.cont [3/16] %v1964, 128
      %2213 = vxpose.xlu0.b32.cont [4/16] %v1967, 128
      %2214 = vxpose.xlu0.b32.cont [5/16] %v1972, 128
      %2215 = vxpose.xlu0.b32.cont [6/16] %v1975, 128
      %2216 = vxpose.xlu0.b32.cont [7/16] %v1980, 128
      %2217 = vxpose.xlu0.b32.cont [8/16] %v1983, 128
      %2218 = vxpose.xlu0.b32.cont [9/16] %v1988, 128
      %2219 = vxpose.xlu0.b32.cont [10/16] %v1991, 128
      %2220 = vxpose.xlu0.b32.cont [11/16] %v1996, 128
      %2221 = vxpose.xlu0.b32.cont [12/16] %v1999, 128
      %2222 = vxpose.xlu0.b32.cont [13/16] %v2004, 128
      %2223 = vxpose.xlu0.b32.cont [14/16] %v2007, 128
      %2224 = vxpose.xlu0.b32.cont [15/16] %v2012, 128
      %2225 = vxpose.xlu0.b32.end [16/16] %v2015, 128
      %v2226 = vpop.trf.xlu0
      %v2227 = vpop.trf.xlu0
      %v2228 = vpop.trf.xlu0
      %v2229 = vpop.trf.xlu0
      %v2230 = vpop.trf.xlu0
      %v2231 = vpop.trf.xlu0
      %v2232 = vpop.trf.xlu0
      %v2233 = vpop.trf.xlu0
      %v2234 = vpop.trf.xlu0
      %v2235 = vpop.trf.xlu0
      %v2236 = vpop.trf.xlu0
      %v2237 = vpop.trf.xlu0
      %v2238 = vpop.trf.xlu0
      %v2239 = vpop.trf.xlu0
      %v2240 = vpop.trf.xlu0
      %v2241 = vpop.trf.xlu0
      %2242 = vxpose.xlu0.b32.start [1/16] %v2020, 128
      %2243 = vxpose.xlu0.b32.cont [2/16] %v2023, 128
      %2244 = vxpose.xlu0.b32.cont [3/16] %v2028, 128
      %2245 = vxpose.xlu0.b32.cont [4/16] %v2031, 128
      %2246 = vxpose.xlu0.b32.cont [5/16] %v2036, 128
      %2247 = vxpose.xlu0.b32.cont [6/16] %v2039, 128
      %2248 = vxpose.xlu0.b32.cont [7/16] %v2044, 128
      %2249 = vxpose.xlu0.b32.cont [8/16] %v2047, 128
      %2250 = vxpose.xlu0.b32.cont [9/16] %v2052, 128
      %2251 = vxpose.xlu0.b32.cont [10/16] %v2055, 128
      %2252 = vxpose.xlu0.b32.cont [11/16] %v2060, 128
      %2253 = vxpose.xlu0.b32.cont [12/16] %v2063, 128
      %2254 = vxpose.xlu0.b32.cont [13/16] %v2068, 128
      %2255 = vxpose.xlu0.b32.cont [14/16] %v2071, 128
      %2256 = vxpose.xlu0.b32.cont [15/16] %v2076, 128
      %2257 = vxpose.xlu0.b32.end [16/16] %v2079, 128
      %v2258 = vpop.trf.xlu0
      %v2259 = vpop.trf.xlu0
      %v2260 = vpop.trf.xlu0
      %v2261 = vpop.trf.xlu0
      %v2262 = vpop.trf.xlu0
      %v2263 = vpop.trf.xlu0
      %v2264 = vpop.trf.xlu0
      %v2265 = vpop.trf.xlu0
      %v2266 = vpop.trf.xlu0
      %v2267 = vpop.trf.xlu0
      %v2268 = vpop.trf.xlu0
      %v2269 = vpop.trf.xlu0
      %v2270 = vpop.trf.xlu0
      %v2271 = vpop.trf.xlu0
      %v2272 = vpop.trf.xlu0
      %v2273 = vpop.trf.xlu0
      %2274 = vxpose.xlu0.b32.start [1/16] %v2084, 128
      %2275 = vxpose.xlu0.b32.cont [2/16] %v2087, 128
      %2276 = vxpose.xlu0.b32.cont [3/16] %v2092, 128
      %2277 = vxpose.xlu0.b32.cont [4/16] %v2095, 128
      %2278 = vxpose.xlu0.b32.cont [5/16] %v2100, 128
      %2279 = vxpose.xlu0.b32.cont [6/16] %v2103, 128
      %2280 = vxpose.xlu0.b32.cont [7/16] %v2108, 128
      %2281 = vxpose.xlu0.b32.cont [8/16] %v2111, 128
      %2282 = vxpose.xlu0.b32.cont [9/16] %v2116, 128
      %2283 = vxpose.xlu0.b32.cont [10/16] %v2119, 128
      %2284 = vxpose.xlu0.b32.cont [11/16] %v2124, 128
      %2285 = vxpose.xlu0.b32.cont [12/16] %v2127, 128
      %2286 = vxpose.xlu0.b32.cont [13/16] %v2132, 128
      %2287 = vxpose.xlu0.b32.cont [14/16] %v2135, 128
      %2288 = vxpose.xlu0.b32.cont [15/16] %v2140, 128
      %2289 = vxpose.xlu0.b32.end [16/16] %v2143, 128
      %v2290 = vpop.trf.xlu0
      %v2291 = vpop.trf.xlu0
      %v2292 = vpop.trf.xlu0
      %v2293 = vpop.trf.xlu0
      %v2294 = vpop.trf.xlu0
      %v2295 = vpop.trf.xlu0
      %v2296 = vpop.trf.xlu0
      %v2297 = vpop.trf.xlu0
      %v2298 = vpop.trf.xlu0
      %v2299 = vpop.trf.xlu0
      %v2300 = vpop.trf.xlu0
      %v2301 = vpop.trf.xlu0
      %v2302 = vpop.trf.xlu0
      %v2303 = vpop.trf.xlu0
      %v2304 = vpop.trf.xlu0
      %v2305 = vpop.trf.xlu0
      %2306 = vxpose.xlu0.b32.start [1/16] %v2148, 128
      %2307 = vxpose.xlu0.b32.cont [2/16] %v2151, 128
      %2308 = vxpose.xlu0.b32.cont [3/16] %v2156, 128
      %2309 = vxpose.xlu0.b32.cont [4/16] %v2159, 128
      %2310 = vxpose.xlu0.b32.cont [5/16] %v2164, 128
      %2311 = vxpose.xlu0.b32.cont [6/16] %v2167, 128
      %2312 = vxpose.xlu0.b32.cont [7/16] %v2172, 128
      %2313 = vxpose.xlu0.b32.cont [8/16] %v2175, 128
      %2314 = vxpose.xlu0.b32.cont [9/16] %v2180, 128
      %2315 = vxpose.xlu0.b32.cont [10/16] %v2183, 128
      %2316 = vxpose.xlu0.b32.cont [11/16] %v2188, 128
      %2317 = vxpose.xlu0.b32.cont [12/16] %v2191, 128
      %2318 = vxpose.xlu0.b32.cont [13/16] %v2196, 128
      %2319 = vxpose.xlu0.b32.cont [14/16] %v2199, 128
      %2320 = vxpose.xlu0.b32.cont [15/16] %v2204, 128
      %2321 = vxpose.xlu0.b32.end [16/16] %v2207, 128
      %v2322 = vpop.trf.xlu0
      %v2323 = vpop.trf.xlu0
      %v2324 = vpop.trf.xlu0
      %v2325 = vpop.trf.xlu0
      %v2326 = vpop.trf.xlu0
      %v2327 = vpop.trf.xlu0
      %v2328 = vpop.trf.xlu0
      %v2329 = vpop.trf.xlu0
      %v2330 = vpop.trf.xlu0
      %v2331 = vpop.trf.xlu0
      %v2332 = vpop.trf.xlu0
      %v2333 = vpop.trf.xlu0
      %v2334 = vpop.trf.xlu0
      %v2335 = vpop.trf.xlu0
      %v2336 = vpop.trf.xlu0
      %v2337 = vpop.trf.xlu0
      %2338 = vst [vmem:[%s334] sm:$0xff] %v2226
      %2339 = vst [vmem:[%s334 + $0x8] sm:$0xff] %v2258
      %2340 = vst [vmem:[%s334 + $0x10] sm:$0xff] %v2290
      %2341 = vst [vmem:[%s334 + $0x18] sm:$0xff] %v2322
      %s2342 = smul.u32 4, %s20
      %p2343 = scmp.lt.s32.totalorder %s2342, 15
      %s2344 = scalar_select %p2343, %s2342, 15
      %s2345 = smul.addr %s2344, 8
      %s2346 = scalar_lea.vmem %s9, %s2345
      // Predicated region
      $region57: #{coarse_fine_nerf.1} parent=55 // pred_check
        %p2347 = pneg %p232
      $region58: #{coarse_fine_nerf.1} parent=55 // pred_check_branch
        %2349 = sbr.rel (%p2347) target = $region60
      $region59: #{coarse_fine_nerf.1} parent=55 // pred_region
        %s2350 = smul.u32 4, %s20
      $region60: #{coarse_fine_nerf.1} parent=55 // pred_fallthru
        _
    $region56: #{coarse_fine_nerf.1} parent=5 // pred_fallthru
      _
    %p2351 = scmp.le.s32.totalorder 2, %s15
    // Predicated region
    $region61: #{coarse_fine_nerf.1} parent=5 // pred_check
      %p2352 = pneg %p2351
    $region62: #{coarse_fine_nerf.1} parent=5 // pred_check_branch
      %2354 = sbr.rel (%p2352) target = $region64
    $region63: #{coarse_fine_nerf.1} parent=5 // pred_region
      %s2355 = ssub.s32 %s15, 2
      // Predicated region
      $region65: #{coarse_fine_nerf.1} parent=63 // pred_check
        %p2356 = pneg %p238
      $region66: #{coarse_fine_nerf.1} parent=63 // pred_check_branch
        %2358 = sbr.rel (%p2356) target = $region68
      $region67: #{coarse_fine_nerf.1} parent=63 // pred_region
        %s2359 = smul.u32 4, %s21
        %p2360 = scmp.lt.s32.totalorder %s2359, 15
        %s2361 = scalar_select %p2360, %s2359, 15
        %s2362 = smul.addr %s2361, 8
        %s2363 = scalar_lea.vmem %s9, %s2362
      $region68: #{coarse_fine_nerf.1} parent=63 // pred_fallthru
        _
    $region64: #{coarse_fine_nerf.1} parent=5 // pred_fallthru
      _
  $region6: #{coarse_fine_nerf.1} parent=0 // loop_footer
    %s19 = sadd.s32 1, %s15
  $region7: #{coarse_fine_nerf.1} parent=0 // loop_footer_branch
    %14 = sbr.rel target = $region3
  $region8: #{coarse_fine_nerf.1} parent=0 // loop_exit
    _

</llo_original>
